<compile_context>
chip_gen: v7x
topology: tpu7x:2x2x1
jax: 0.10.0
libtpu: 0.0.40
codegen_flags: <defaults>
</compile_context>

<pallas_src>
import functools

import jax
import jax.numpy as jnp
import numpy as np
from jax.experimental import pallas as pl
from jax.experimental.pallas import tpu as pltpu


def _round_up(x: int, m: int) -> int:
    return (x + m - 1) // m * m


def _pad2(a, rows: int, cols: int):
    r, c = a.shape
    return jnp.pad(a, ((0, rows - r), (0, cols - c)))


def _cores_per_chip() -> int:
    """Best-effort TensorCores-per-chip count (megacore awareness for v7x)."""
    try:
        d = jax.devices()[0]
        kind = str(getattr(d, "device_kind", "")).lower()
        if "v7" in kind:
            return 2
        nc = getattr(d, "num_cores", None)
        if nc:
            return max(1, int(nc))
    except Exception:
        pass
    return 1


def _vae_kernel(
    # batch-tiled inputs (all lane-padded to multiples of 128)
    xa_ref, state_ref, noise_ref,
    # resident weights / biases (lane/sublane padded in the wrapper)
    we1_ref, be1_ref,              # encoder layer 1 ([state|action] fused)
    we2_ref, be2_ref,              # encoder layer 2
    wms_ref, bms_ref,              # fused mean|log_std head, 128-aligned slots
    wd1_ref, bd1_ref,              # decoder layer 1 ([state|latent] fused)
    wd2_ref, bd2_ref,              # decoder layer 2 (columns padded to 128)
    # lane-dense packed output slab  [recon | mean | std]
    out_ref,
    *, max_action: float, matmul_dtype,
):
    lat_pad = bms_ref.shape[-1] // 2      # 128-aligned latent slot width
    act_pad = wd2_ref.shape[-1]           # 128-aligned action slot width

    def mm(x, w_ref):
        # MXU matmul; f32 accumulation regardless of input dtype.
        return jnp.dot(x.astype(matmul_dtype), w_ref[...],
                       preferred_element_type=jnp.float32)

    xa = xa_ref[...]                      # (TB, sa_pad)  = [state|action|0]
    s = state_ref[...]                    # (TB, st_pad)  = [state|0]

    # ---- encoder(torch.cat([state, action], -1)) ----
    h1 = jnp.maximum(mm(xa, we1_ref) + be1_ref[...], 0.0)
    z = mm(h1, we2_ref) + be2_ref[...]

    # ---- fused mean / log_std head; each head is a full 128-lane slot ----
    ms = mm(z, wms_ref) + bms_ref[...]
    mean = ms[:, :lat_pad]
    log_std = jnp.clip(ms[:, lat_pad:], -4.0, 15.0)
    std = jnp.exp(log_std)

    # ---- reparameterization: mean + std * randn_like(std) ----
    latent_z = mean + std * noise_ref[...]     # padded lanes: 0 + 1*0 = 0

    # ---- decode: max_action * tanh(decoder(cat([state, latent_z], -1))) ----
    d1_in = jnp.concatenate([s, latent_z], axis=-1)   # two aligned 128-slabs
    d1 = jnp.maximum(mm(d1_in, wd1_ref) + bd1_ref[...], 0.0)
    recon = max_action * jnp.tanh(mm(d1, wd2_ref) + bd2_ref[...])

    # ---- three unmasked, 128-aligned stores into the packed output slab ----
    out_ref[:, :act_pad] = recon.astype(out_ref.dtype)
    out_ref[:, act_pad:act_pad + lat_pad] = mean.astype(out_ref.dtype)
    out_ref[:, act_pad + lat_pad:] = std.astype(out_ref.dtype)


def vae_forward(state, action, noise, params, *, max_action: float,
                use_bf16: bool = True, batch_tile: int = 2048):
    """Fused VAE forward. Returns (reconstruction, mean, std)."""
    B, state_dim = state.shape
    action_dim = action.shape[1]
    latent_dim = noise.shape[1]
    sa_dim = state_dim + action_dim
    enc_hidden = params["we1s"].shape[1]
    hidden_dim = params["we2"].shape[1]
    dec_hidden = params["wd1s"].shape[1]

    matmul_dtype = jnp.bfloat16 if use_bf16 else jnp.float32

    # ---- lane padding: every matmul K / N dim -> multiple of 128 ----
    sa_pad = _round_up(sa_dim, 128)
    st_pad = _round_up(state_dim, 128)
    lat_pad = _round_up(latent_dim, 128)
    act_pad = _round_up(action_dim, 128)
    E = _round_up(enc_hidden, 128)
    H = _round_up(hidden_dim, 128)
    D = _round_up(dec_hidden, 128)
    out_cols_pad = act_pad + 2 * lat_pad

    # ---- wrapper-side weight packing + zero padding (identical math) ----
    we1 = _pad2(jnp.concatenate([params["we1s"], params["we1a"]], axis=0),
                sa_pad, E).astype(matmul_dtype)
    be1 = _pad2(params["be1"], 1, E).astype(jnp.float32)
    we2 = _pad2(params["we2"], E, H).astype(matmul_dtype)
    be2 = _pad2(params["be2"], 1, H).astype(jnp.float32)
    wms = jnp.concatenate([_pad2(params["wm"], H, lat_pad),
                           _pad2(params["ws"], H, lat_pad)],
                          axis=-1).astype(matmul_dtype)
    bms = jnp.concatenate([_pad2(params["bm"], 1, lat_pad),
                           _pad2(params["bs"], 1, lat_pad)],
                          axis=-1).astype(jnp.float32)
    wd1 = jnp.concatenate([_pad2(params["wd1s"], st_pad, D),
                           _pad2(params["wd1z"], lat_pad, D)],
                          axis=0).astype(matmul_dtype)
    bd1 = _pad2(params["bd1"], 1, D).astype(jnp.float32)
    wd2 = _pad2(params["wd2"], D, act_pad).astype(matmul_dtype)
    bd2 = _pad2(params["bd2"], 1, act_pad).astype(jnp.float32)
    weight_args = (we1, be1, we2, be2, wms, bms, wd1, bd1, wd2, bd2)

    # ---- batch tiling: sublane-aligned, generation-aware grid ----
    TB = max(8, _round_up(min(batch_tile, _round_up(B, 8)), 8))
    ncores = _cores_per_chip()
    if ncores > 1:
        # ensure the ("parallel",) batch grid has >= ncores steps (megacore)
        TB = max(8, min(TB, _round_up(pl.cdiv(_round_up(B, 8), ncores), 8)))
    B_pad = _round_up(B, TB)

    xa = _pad2(jnp.concatenate([state, action], axis=-1), B_pad, sa_pad)
    state_p = _pad2(state, B_pad, st_pad)
    noise_p = _pad2(noise, B_pad, lat_pad)

    def row_spec(cols):
        return pl.BlockSpec((TB, cols), lambda i: (i, 0))

    def resident_spec(shape, single_buffer):
        if single_buffer:
            # block index never changes -> double buffering only wastes VMEM
            return pl.BlockSpec(shape, lambda i: (0, 0),
                                pipeline_mode=pl.Buffered(1))
        return pl.BlockSpec(shape, lambda i: (0, 0))

    # ---- explicit VMEM budget (v5e default scoped limit is only 16 MiB) ----
    weight_bytes = sum(int(a.size) * a.dtype.itemsize for a in weight_args)
    stream_bytes = 2 * TB * (sa_pad + st_pad + lat_pad + out_cols_pad) * 4
    inter_bytes = TB * (E + H + 2 * lat_pad + st_pad + lat_pad + D) * 4
    vmem_limit = int(min(max(2 * weight_bytes + stream_bytes + inter_bytes
                             + (8 << 20), 32 << 20), 100 << 20))

    flops = 2 * B_pad * (sa_pad * E + E * H + H * 2 * lat_pad
                         + (st_pad + lat_pad) * D + D * act_pad)
    transcendentals = B_pad * (lat_pad + act_pad)
    bytes_accessed = int(sum(int(a.size) * a.dtype.itemsize
                             for a in (xa, state_p, noise_p) + weight_args)
                         + B_pad * out_cols_pad * 4)

    kernel = functools.partial(_vae_kernel, max_action=float(max_action),
                               matmul_dtype=matmul_dtype)

    def build(single_buffer):
        return pl.pallas_call(
            kernel,
            out_shape=jax.ShapeDtypeStruct((B_pad, out_cols_pad), jnp.float32),
            grid=(B_pad // TB,),
            in_specs=[row_spec(sa_pad), row_spec(st_pad), row_spec(lat_pad)]
                     + [resident_spec(a.shape, single_buffer)
                        for a in weight_args],
            out_specs=pl.BlockSpec((TB, out_cols_pad), lambda i: (i, 0)),
            compiler_params=pltpu.CompilerParams(
                dimension_semantics=("parallel",),
                vmem_limit_bytes=vmem_limit),
            cost_estimate=pl.CostEstimate(
                flops=flops, transcendentals=transcendentals,
                bytes_accessed=bytes_accessed),
        )

    try:
        packed = build(True)(xa, state_p, noise_p, *weight_args)
    except Exception:
        # pl.Buffered(1) not supported on this JAX build: fall back to the
        # default pipeline mode (double-buffered resident weights).
        packed = build(False)(xa, state_p, noise_p, *weight_args)

    recon = packed[:B, :action_dim]
    mean = packed[:B, act_pad:act_pad + latent_dim]
    std = packed[:B, act_pad + lat_pad:act_pad + lat_pad + latent_dim]
    return recon, mean, std


def init_params(key, state_dim, action_dim, enc_hidden, hidden_dim,
                dec_hidden, latent_dim):
    """Deterministic synthetic weights (shapes follow the module's __init__)."""
    ks = jax.random.split(key, 12)

    def w(k, shape, fan_in):
        return jax.random.uniform(k, shape, jnp.float32, -1.0, 1.0) / jnp.sqrt(fan_in)

    p = {}
    # encoder layer 1: (state_dim + action_dim) -> enc_hidden, split rows
    p["we1s"] = w(ks[0], (state_dim, enc_hidden), state_dim + action_dim)
    p["we1a"] = w(ks[1], (action_dim, enc_hidden), state_dim + action_dim)
    p["be1"] = jnp.zeros((1, enc_hidden), jnp.float32)
    # encoder layer 2: enc_hidden -> hidden_dim
    p["we2"] = w(ks[2], (enc_hidden, hidden_dim), enc_hidden)
    p["be2"] = jnp.zeros((1, hidden_dim), jnp.float32)
    # mean / log_std heads: hidden_dim -> latent_dim
    p["wm"] = w(ks[3], (hidden_dim, latent_dim), hidden_dim)
    p["bm"] = jnp.zeros((1, latent_dim), jnp.float32)
    p["ws"] = w(ks[4], (hidden_dim, latent_dim), hidden_dim)
    p["bs"] = jnp.zeros((1, latent_dim), jnp.float32)
    # decoder layer 1: (state_dim + latent_dim) -> dec_hidden, split rows
    p["wd1s"] = w(ks[5], (state_dim, dec_hidden), state_dim + latent_dim)
    p["wd1z"] = w(ks[6], (latent_dim, dec_hidden), state_dim + latent_dim)
    p["bd1"] = jnp.zeros((1, dec_hidden), jnp.float32)
    # decoder layer 2: dec_hidden -> action_dim
    p["wd2"] = w(ks[7], (dec_hidden, action_dim), dec_hidden)
    p["bd2"] = jnp.zeros((1, action_dim), jnp.float32)
    return p


def vae_forward_ref(state, action, noise, p, *, max_action):
    """Pure-JAX reference for correctness check."""
    h1 = jnp.maximum(state @ p["we1s"] + action @ p["we1a"] + p["be1"], 0.0)
    z = h1 @ p["we2"] + p["be2"]
    mean = z @ p["wm"] + p["bm"]
    log_std = jnp.clip(z @ p["ws"] + p["bs"], -4.0, 15.0)
    std = jnp.exp(log_std)
    lat = mean + std * noise
    d1 = jnp.maximum(state @ p["wd1s"] + lat @ p["wd1z"] + p["bd1"], 0.0)
    recon = max_action * jnp.tanh(d1 @ p["wd2"] + p["bd2"])
    return recon, mean, std


if __name__ == "__main__":
    # small shapes consistent with the forward pass
    B = 8
    state_dim, action_dim = 16, 8
    enc_hidden, hidden_dim, dec_hidden, latent_dim = 32, 32, 32, 8
    max_action = 1.0

    key = jax.random.PRNGKey(0)
    k_s, k_a, k_n, k_p = jax.random.split(key, 4)

    state = jax.random.normal(k_s, (B, state_dim), jnp.float32)
    action = jax.random.normal(k_a, (B, action_dim), jnp.float32)
    # randn_like(std): sampled outside the kernel for deterministic reproduction
    noise = jax.random.normal(k_n, (B, latent_dim), jnp.float32)

    params = init_params(k_p, state_dim, action_dim, enc_hidden,
                         hidden_dim, dec_hidden, latent_dim)

    r_ref, m_ref, s_ref = vae_forward_ref(state, action, noise, params,
                                          max_action=max_action)

    # default fast path: bf16 MXU inputs with f32 accumulation
    recon, mean, std = vae_forward(state, action, noise, params,
                                   max_action=max_action, use_bf16=True)
    jax.block_until_ready((recon, mean, std))
    np.testing.assert_allclose(np.asarray(recon), np.asarray(r_ref), rtol=2e-2, atol=2e-2)
    np.testing.assert_allclose(np.asarray(mean), np.asarray(m_ref), rtol=2e-2, atol=2e-2)
    np.testing.assert_allclose(np.asarray(std), np.asarray(s_ref), rtol=2e-2, atol=2e-2)

    # exact path: f32 matmuls
    recon32, mean32, std32 = vae_forward(state, action, noise, params,
                                         max_action=max_action, use_bf16=False)
    jax.block_until_ready((recon32, mean32, std32))
    np.testing.assert_allclose(np.asarray(recon32), np.asarray(r_ref), rtol=1e-4, atol=1e-5)
    np.testing.assert_allclose(np.asarray(mean32), np.asarray(m_ref), rtol=1e-4, atol=1e-5)
    np.testing.assert_allclose(np.asarray(std32), np.asarray(s_ref), rtol=1e-4, atol=1e-5)

    print("KERNEL_OK")
</pallas_src>

<mosaic_0001>
module attributes {stable_mosaic.version = 11 : i64} {
  func.func @_vae_kernel(%arg0: i32, %arg1: memref<8x128xf32, #tpu.memory_space<vmem>>, %arg2: memref<8x128xf32, #tpu.memory_space<vmem>>, %arg3: memref<8x128xf32, #tpu.memory_space<vmem>>, %arg4: memref<128x128xbf16, #tpu.memory_space<vmem>>, %arg5: memref<1x128xf32, #tpu.memory_space<vmem>>, %arg6: memref<128x128xbf16, #tpu.memory_space<vmem>>, %arg7: memref<1x128xf32, #tpu.memory_space<vmem>>, %arg8: memref<128x256xbf16, #tpu.memory_space<vmem>>, %arg9: memref<1x256xf32, #tpu.memory_space<vmem>>, %arg10: memref<256x128xbf16, #tpu.memory_space<vmem>>, %arg11: memref<1x128xf32, #tpu.memory_space<vmem>>, %arg12: memref<128x128xbf16, #tpu.memory_space<vmem>>, %arg13: memref<1x128xf32, #tpu.memory_space<vmem>>, %arg14: memref<8x384xf32, #tpu.memory_space<vmem>>) attributes {dimension_semantics = [#tpu.dimension_semantics<parallel>], iteration_bounds = array<i64: 1>, scalar_prefetch = 0 : i64, scratch_operands = 0 : i64, tpu.core_type = #tpu.core_type<tc>, window_params = [{transform_indices = @transform_0, window_bounds = array<i64: 8, 128>}, {transform_indices = @transform_1, window_bounds = array<i64: 8, 128>}, {transform_indices = @transform_2, window_bounds = array<i64: 8, 128>}, {pipeline_mode = #tpu.pipeline_mode<synchronous>, transform_indices = @transform_3, window_bounds = array<i64: 128, 128>}, {pipeline_mode = #tpu.pipeline_mode<synchronous>, transform_indices = @transform_4, window_bounds = array<i64: 1, 128>}, {pipeline_mode = #tpu.pipeline_mode<synchronous>, transform_indices = @transform_5, window_bounds = array<i64: 128, 128>}, {pipeline_mode = #tpu.pipeline_mode<synchronous>, transform_indices = @transform_6, window_bounds = array<i64: 1, 128>}, {pipeline_mode = #tpu.pipeline_mode<synchronous>, transform_indices = @transform_7, window_bounds = array<i64: 128, 256>}, {pipeline_mode = #tpu.pipeline_mode<synchronous>, transform_indices = @transform_8, window_bounds = array<i64: 1, 256>}, {pipeline_mode = #tpu.pipeline_mode<synchronous>, transform_indices = @transform_9, window_bounds = array<i64: 256, 128>}, {pipeline_mode = #tpu.pipeline_mode<synchronous>, transform_indices = @transform_10, window_bounds = array<i64: 1, 128>}, {pipeline_mode = #tpu.pipeline_mode<synchronous>, transform_indices = @transform_11, window_bounds = array<i64: 128, 128>}, {pipeline_mode = #tpu.pipeline_mode<synchronous>, transform_indices = @transform_12, window_bounds = array<i64: 1, 128>}, {transform_indices = @transform_13, window_bounds = array<i64: 8, 384>}]} {
    %c0 = arith.constant 0 : index
    %c0_0 = arith.constant 0 : index
    %0 = vector.load %arg1[%c0, %c0_0] : memref<8x128xf32, #tpu.memory_space<vmem>>, vector<8x128xf32>
    %c0_1 = arith.constant 0 : index
    %c0_2 = arith.constant 0 : index
    %1 = vector.load %arg2[%c0_1, %c0_2] : memref<8x128xf32, #tpu.memory_space<vmem>>, vector<8x128xf32>
    %2 = arith.truncf %0 : vector<8x128xf32> to vector<8x128xbf16>
    %c0_3 = arith.constant 0 : index
    %c0_4 = arith.constant 0 : index
    %3 = vector.load %arg4[%c0_3, %c0_4] : memref<128x128xbf16, #tpu.memory_space<vmem>>, vector<128x128xbf16>
    %cst = arith.constant dense<0.000000e+00> : vector<8x128xf32>
    %4 = tpu.matmul %2, %3, %cst {dimension_numbers = #tpu.dot_dimension_numbers<[1], [0], [0], [1], [0, 0, 1, 1], [], []>} : vector<8x128xbf16>, vector<128x128xbf16>, vector<8x128xf32> -> vector<8x128xf32>
    %c0_5 = arith.constant 0 : index
    %c0_6 = arith.constant 0 : index
    %5 = vector.load %arg5[%c0_5, %c0_6] : memref<1x128xf32, #tpu.memory_space<vmem>>, vector<1x128xf32>
    %6 = vector.broadcast %5 : vector<1x128xf32> to vector<8x128xf32>
    %7 = arith.addf %4, %6 : vector<8x128xf32>
    %cst_7 = arith.constant 0.000000e+00 : f32
    %8 = vector.broadcast %cst_7 : f32 to vector<8x128xf32>
    %9 = arith.maximumf %7, %8 : vector<8x128xf32>
    %10 = arith.truncf %9 : vector<8x128xf32> to vector<8x128xbf16>
    %c0_8 = arith.constant 0 : index
    %c0_9 = arith.constant 0 : index
    %11 = vector.load %arg6[%c0_8, %c0_9] : memref<128x128xbf16, #tpu.memory_space<vmem>>, vector<128x128xbf16>
    %cst_10 = arith.constant dense<0.000000e+00> : vector<8x128xf32>
    %12 = tpu.matmul %10, %11, %cst_10 {dimension_numbers = #tpu.dot_dimension_numbers<[1], [0], [0], [1], [0, 0, 1, 1], [], []>} : vector<8x128xbf16>, vector<128x128xbf16>, vector<8x128xf32> -> vector<8x128xf32>
    %c0_11 = arith.constant 0 : index
    %c0_12 = arith.constant 0 : index
    %13 = vector.load %arg7[%c0_11, %c0_12] : memref<1x128xf32, #tpu.memory_space<vmem>>, vector<1x128xf32>
    %14 = vector.broadcast %13 : vector<1x128xf32> to vector<8x128xf32>
    %15 = arith.addf %12, %14 : vector<8x128xf32>
    %16 = arith.truncf %15 : vector<8x128xf32> to vector<8x128xbf16>
    %c0_13 = arith.constant 0 : index
    %c0_14 = arith.constant 0 : index
    %17 = vector.load %arg8[%c0_13, %c0_14] : memref<128x256xbf16, #tpu.memory_space<vmem>>, vector<128x256xbf16>
    %cst_15 = arith.constant dense<0.000000e+00> : vector<8x256xf32>
    %18 = tpu.matmul %16, %17, %cst_15 {dimension_numbers = #tpu.dot_dimension_numbers<[1], [0], [0], [1], [0, 0, 1, 1], [], []>} : vector<8x128xbf16>, vector<128x256xbf16>, vector<8x256xf32> -> vector<8x256xf32>
    %c0_16 = arith.constant 0 : index
    %c0_17 = arith.constant 0 : index
    %19 = vector.load %arg9[%c0_16, %c0_17] : memref<1x256xf32, #tpu.memory_space<vmem>>, vector<1x256xf32>
    %20 = vector.broadcast %19 : vector<1x256xf32> to vector<8x256xf32>
    %21 = arith.addf %18, %20 : vector<8x256xf32>
    %22 = vector.extract_strided_slice %21 {offsets = [0, 0], sizes = [8, 128], strides = [1, 1]} : vector<8x256xf32> to vector<8x128xf32>
    %23 = vector.extract_strided_slice %21 {offsets = [0, 128], sizes = [8, 128], strides = [1, 1]} : vector<8x256xf32> to vector<8x128xf32>
    %cst_18 = arith.constant -4.000000e+00 : f32
    %cst_19 = arith.constant 1.500000e+01 : f32
    %24 = vector.broadcast %cst_18 : f32 to vector<8x128xf32>
    %25 = arith.maximumf %24, %23 : vector<8x128xf32>
    %26 = vector.broadcast %cst_19 : f32 to vector<8x128xf32>
    %27 = arith.minimumf %26, %25 : vector<8x128xf32>
    %28 = math.exp %27 : vector<8x128xf32>
    %c0_20 = arith.constant 0 : index
    %c0_21 = arith.constant 0 : index
    %29 = vector.load %arg3[%c0_20, %c0_21] : memref<8x128xf32, #tpu.memory_space<vmem>>, vector<8x128xf32>
    %30 = arith.mulf %28, %29 : vector<8x128xf32>
    %31 = arith.addf %22, %30 : vector<8x128xf32>
    %32 = tpu.concatenate %1, %31 in 1 : vector<8x128xf32>, vector<8x128xf32> -> vector<8x256xf32>
    %33 = arith.truncf %32 : vector<8x256xf32> to vector<8x256xbf16>
    %c0_22 = arith.constant 0 : index
    %c0_23 = arith.constant 0 : index
    %34 = vector.load %arg10[%c0_22, %c0_23] : memref<256x128xbf16, #tpu.memory_space<vmem>>, vector<256x128xbf16>
    %cst_24 = arith.constant dense<0.000000e+00> : vector<8x128xf32>
    %35 = tpu.matmul %33, %34, %cst_24 {dimension_numbers = #tpu.dot_dimension_numbers<[1], [0], [0], [1], [0, 0, 1, 1], [], []>} : vector<8x256xbf16>, vector<256x128xbf16>, vector<8x128xf32> -> vector<8x128xf32>
    %c0_25 = arith.constant 0 : index
    %c0_26 = arith.constant 0 : index
    %36 = vector.load %arg11[%c0_25, %c0_26] : memref<1x128xf32, #tpu.memory_space<vmem>>, vector<1x128xf32>
    %37 = vector.broadcast %36 : vector<1x128xf32> to vector<8x128xf32>
    %38 = arith.addf %35, %37 : vector<8x128xf32>
    %cst_27 = arith.constant 0.000000e+00 : f32
    %39 = vector.broadcast %cst_27 : f32 to vector<8x128xf32>
    %40 = arith.maximumf %38, %39 : vector<8x128xf32>
    %41 = arith.truncf %40 : vector<8x128xf32> to vector<8x128xbf16>
    %c0_28 = arith.constant 0 : index
    %c0_29 = arith.constant 0 : index
    %42 = vector.load %arg12[%c0_28, %c0_29] : memref<128x128xbf16, #tpu.memory_space<vmem>>, vector<128x128xbf16>
    %cst_30 = arith.constant dense<0.000000e+00> : vector<8x128xf32>
    %43 = tpu.matmul %41, %42, %cst_30 {dimension_numbers = #tpu.dot_dimension_numbers<[1], [0], [0], [1], [0, 0, 1, 1], [], []>} : vector<8x128xbf16>, vector<128x128xbf16>, vector<8x128xf32> -> vector<8x128xf32>
    %c0_31 = arith.constant 0 : index
    %c0_32 = arith.constant 0 : index
    %44 = vector.load %arg13[%c0_31, %c0_32] : memref<1x128xf32, #tpu.memory_space<vmem>>, vector<1x128xf32>
    %45 = vector.broadcast %44 : vector<1x128xf32> to vector<8x128xf32>
    %46 = arith.addf %43, %45 : vector<8x128xf32>
    %47 = math.tanh %46 : vector<8x128xf32>
    %cst_33 = arith.constant 1.000000e+00 : f32
    %48 = vector.broadcast %cst_33 : f32 to vector<8x128xf32>
    %49 = arith.mulf %48, %47 : vector<8x128xf32>
    %c0_34 = arith.constant 0 : index
    %c0_35 = arith.constant 0 : index
    %50 = vector.load %arg14[%c0_34, %c0_35] : memref<8x384xf32, #tpu.memory_space<vmem>>, vector<8x128xf32>
    tpu.vector_store %arg14[%c0_34, %c0_35], %49 {strides = array<i32>} : memref<8x384xf32, #tpu.memory_space<vmem>>, vector<8x128xf32>,
    %c0_36 = arith.constant 0 : index
    %c128 = arith.constant 128 : index
    %51 = vector.load %arg14[%c0_36, %c128] : memref<8x384xf32, #tpu.memory_space<vmem>>, vector<8x128xf32>
    tpu.vector_store %arg14[%c0_36, %c128], %22 {strides = array<i32>} : memref<8x384xf32, #tpu.memory_space<vmem>>, vector<8x128xf32>,
    %c0_37 = arith.constant 0 : index
    %c256 = arith.constant 256 : index
    %52 = vector.load %arg14[%c0_37, %c256] : memref<8x384xf32, #tpu.memory_space<vmem>>, vector<8x128xf32>
    tpu.vector_store %arg14[%c0_37, %c256], %28 {strides = array<i32>} : memref<8x384xf32, #tpu.memory_space<vmem>>, vector<8x128xf32>,
    return
  }
  func.func @transform_0(%arg0: i32) -> (i32, i32) {
    %c0_i32 = arith.constant 0 : i32
    %c0_i32_0 = arith.constant 0 : i32
    return %arg0, %c0_i32 : i32, i32
  }
  func.func @transform_1(%arg0: i32) -> (i32, i32) {
    %c0_i32 = arith.constant 0 : i32
    %c0_i32_0 = arith.constant 0 : i32
    return %arg0, %c0_i32 : i32, i32
  }
  func.func @transform_2(%arg0: i32) -> (i32, i32) {
    %c0_i32 = arith.constant 0 : i32
    %c0_i32_0 = arith.constant 0 : i32
    return %arg0, %c0_i32 : i32, i32
  }
  func.func @transform_3(%arg0: i32) -> (i32, i32) {
    %c0_i32 = arith.constant 0 : i32
    %c0_i32_0 = arith.constant 0 : i32
    %c0_i32_1 = arith.constant 0 : i32
    return %c0_i32, %c0_i32_0 : i32, i32
  }
  func.func @transform_4(%arg0: i32) -> (i32, i32) {
    %c0_i32 = arith.constant 0 : i32
    %c0_i32_0 = arith.constant 0 : i32
    %c0_i32_1 = arith.constant 0 : i32
    return %c0_i32, %c0_i32_0 : i32, i32
  }
  func.func @transform_5(%arg0: i32) -> (i32, i32) {
    %c0_i32 = arith.constant 0 : i32
    %c0_i32_0 = arith.constant 0 : i32
    %c0_i32_1 = arith.constant 0 : i32
    return %c0_i32, %c0_i32_0 : i32, i32
  }
  func.func @transform_6(%arg0: i32) -> (i32, i32) {
    %c0_i32 = arith.constant 0 : i32
    %c0_i32_0 = arith.constant 0 : i32
    %c0_i32_1 = arith.constant 0 : i32
    return %c0_i32, %c0_i32_0 : i32, i32
  }
  func.func @transform_7(%arg0: i32) -> (i32, i32) {
    %c0_i32 = arith.constant 0 : i32
    %c0_i32_0 = arith.constant 0 : i32
    %c0_i32_1 = arith.constant 0 : i32
    return %c0_i32, %c0_i32_0 : i32, i32
  }
  func.func @transform_8(%arg0: i32) -> (i32, i32) {
    %c0_i32 = arith.constant 0 : i32
    %c0_i32_0 = arith.constant 0 : i32
    %c0_i32_1 = arith.constant 0 : i32
    return %c0_i32, %c0_i32_0 : i32, i32
  }
  func.func @transform_9(%arg0: i32) -> (i32, i32) {
    %c0_i32 = arith.constant 0 : i32
    %c0_i32_0 = arith.constant 0 : i32
    %c0_i32_1 = arith.constant 0 : i32
    return %c0_i32, %c0_i32_0 : i32, i32
  }
  func.func @transform_10(%arg0: i32) -> (i32, i32) {
    %c0_i32 = arith.constant 0 : i32
    %c0_i32_0 = arith.constant 0 : i32
    %c0_i32_1 = arith.constant 0 : i32
    return %c0_i32, %c0_i32_0 : i32, i32
  }
  func.func @transform_11(%arg0: i32) -> (i32, i32) {
    %c0_i32 = arith.constant 0 : i32
    %c0_i32_0 = arith.constant 0 : i32
    %c0_i32_1 = arith.constant 0 : i32
    return %c0_i32, %c0_i32_0 : i32, i32
  }
  func.func @transform_12(%arg0: i32) -> (i32, i32) {
    %c0_i32 = arith.constant 0 : i32
    %c0_i32_0 = arith.constant 0 : i32
    %c0_i32_1 = arith.constant 0 : i32
    return %c0_i32, %c0_i32_0 : i32, i32
  }
  func.func @transform_13(%arg0: i32) -> (i32, i32) {
    %c0_i32 = arith.constant 0 : i32
    %c0_i32_0 = arith.constant 0 : i32
    return %arg0, %c0_i32 : i32, i32
  }
}

module attributes {stable_mosaic.version = 11 : i64} {
  func.func @_vae_kernel(%arg0: i32, %arg1: memref<8x128xf32, #tpu.memory_space<vmem>>, %arg2: memref<8x128xf32, #tpu.memory_space<vmem>>, %arg3: memref<8x128xf32, #tpu.memory_space<vmem>>, %arg4: memref<128x128xbf16, #tpu.memory_space<vmem>>, %arg5: memref<1x128xf32, #tpu.memory_space<vmem>>, %arg6: memref<128x128xbf16, #tpu.memory_space<vmem>>, %arg7: memref<1x128xf32, #tpu.memory_space<vmem>>, %arg8: memref<128x256xbf16, #tpu.memory_space<vmem>>, %arg9: memref<1x256xf32, #tpu.memory_space<vmem>>, %arg10: memref<256x128xbf16, #tpu.memory_space<vmem>>, %arg11: memref<1x128xf32, #tpu.memory_space<vmem>>, %arg12: memref<128x128xbf16, #tpu.memory_space<vmem>>, %arg13: memref<1x128xf32, #tpu.memory_space<vmem>>, %arg14: memref<8x384xf32, #tpu.memory_space<vmem>>) attributes {dimension_semantics = [#tpu.dimension_semantics<parallel>], iteration_bounds = array<i64: 1>, scalar_prefetch = 0 : i64, scratch_operands = 0 : i64, tpu.core_type = #tpu.core_type<tc>, window_params = [{transform_indices = @transform_0, window_bounds = array<i64: 8, 128>}, {transform_indices = @transform_1, window_bounds = array<i64: 8, 128>}, {transform_indices = @transform_2, window_bounds = array<i64: 8, 128>}, {pipeline_mode = #tpu.pipeline_mode<synchronous>, transform_indices = @transform_3, window_bounds = array<i64: 128, 128>}, {pipeline_mode = #tpu.pipeline_mode<synchronous>, transform_indices = @transform_4, window_bounds = array<i64: 1, 128>}, {pipeline_mode = #tpu.pipeline_mode<synchronous>, transform_indices = @transform_5, window_bounds = array<i64: 128, 128>}, {pipeline_mode = #tpu.pipeline_mode<synchronous>, transform_indices = @transform_6, window_bounds = array<i64: 1, 128>}, {pipeline_mode = #tpu.pipeline_mode<synchronous>, transform_indices = @transform_7, window_bounds = array<i64: 128, 256>}, {pipeline_mode = #tpu.pipeline_mode<synchronous>, transform_indices = @transform_8, window_bounds = array<i64: 1, 256>}, {pipeline_mode = #tpu.pipeline_mode<synchronous>, transform_indices = @transform_9, window_bounds = array<i64: 256, 128>}, {pipeline_mode = #tpu.pipeline_mode<synchronous>, transform_indices = @transform_10, window_bounds = array<i64: 1, 128>}, {pipeline_mode = #tpu.pipeline_mode<synchronous>, transform_indices = @transform_11, window_bounds = array<i64: 128, 128>}, {pipeline_mode = #tpu.pipeline_mode<synchronous>, transform_indices = @transform_12, window_bounds = array<i64: 1, 128>}, {transform_indices = @transform_13, window_bounds = array<i64: 8, 384>}]} {
    %c0 = arith.constant 0 : index
    %c0_0 = arith.constant 0 : index
    %0 = vector.load %arg1[%c0, %c0_0] : memref<8x128xf32, #tpu.memory_space<vmem>>, vector<8x128xf32>
    %c0_1 = arith.constant 0 : index
    %c0_2 = arith.constant 0 : index
    %1 = vector.load %arg2[%c0_1, %c0_2] : memref<8x128xf32, #tpu.memory_space<vmem>>, vector<8x128xf32>
    %2 = arith.truncf %0 : vector<8x128xf32> to vector<8x128xbf16>
    %c0_3 = arith.constant 0 : index
    %c0_4 = arith.constant 0 : index
    %3 = vector.load %arg4[%c0_3, %c0_4] : memref<128x128xbf16, #tpu.memory_space<vmem>>, vector<128x128xbf16>
    %cst = arith.constant dense<0.000000e+00> : vector<8x128xf32>
    %4 = tpu.matmul %2, %3, %cst {dimension_numbers = #tpu.dot_dimension_numbers<[1], [0], [0], [1], [0, 0, 1, 1], [], []>} : vector<8x128xbf16>, vector<128x128xbf16>, vector<8x128xf32> -> vector<8x128xf32>
    %c0_5 = arith.constant 0 : index
    %c0_6 = arith.constant 0 : index
    %5 = vector.load %arg5[%c0_5, %c0_6] : memref<1x128xf32, #tpu.memory_space<vmem>>, vector<1x128xf32>
    %6 = vector.broadcast %5 : vector<1x128xf32> to vector<8x128xf32>
    %7 = arith.addf %4, %6 : vector<8x128xf32>
    %cst_7 = arith.constant 0.000000e+00 : f32
    %8 = vector.broadcast %cst_7 : f32 to vector<8x128xf32>
    %9 = arith.maximumf %7, %8 : vector<8x128xf32>
    %10 = arith.truncf %9 : vector<8x128xf32> to vector<8x128xbf16>
    %c0_8 = arith.constant 0 : index
    %c0_9 = arith.constant 0 : index
    %11 = vector.load %arg6[%c0_8, %c0_9] : memref<128x128xbf16, #tpu.memory_space<vmem>>, vector<128x128xbf16>
    %cst_10 = arith.constant dense<0.000000e+00> : vector<8x128xf32>
    %12 = tpu.matmul %10, %11, %cst_10 {dimension_numbers = #tpu.dot_dimension_numbers<[1], [0], [0], [1], [0, 0, 1, 1], [], []>} : vector<8x128xbf16>, vector<128x128xbf16>, vector<8x128xf32> -> vector<8x128xf32>
    %c0_11 = arith.constant 0 : index
    %c0_12 = arith.constant 0 : index
    %13 = vector.load %arg7[%c0_11, %c0_12] : memref<1x128xf32, #tpu.memory_space<vmem>>, vector<1x128xf32>
    %14 = vector.broadcast %13 : vector<1x128xf32> to vector<8x128xf32>
    %15 = arith.addf %12, %14 : vector<8x128xf32>
    %16 = arith.truncf %15 : vector<8x128xf32> to vector<8x128xbf16>
    %c0_13 = arith.constant 0 : index
    %c0_14 = arith.constant 0 : index
    %17 = vector.load %arg8[%c0_13, %c0_14] : memref<128x256xbf16, #tpu.memory_space<vmem>>, vector<128x256xbf16>
    %cst_15 = arith.constant dense<0.000000e+00> : vector<8x256xf32>
    %18 = tpu.matmul %16, %17, %cst_15 {dimension_numbers = #tpu.dot_dimension_numbers<[1], [0], [0], [1], [0, 0, 1, 1], [], []>} : vector<8x128xbf16>, vector<128x256xbf16>, vector<8x256xf32> -> vector<8x256xf32>
    %c0_16 = arith.constant 0 : index
    %c0_17 = arith.constant 0 : index
    %19 = vector.load %arg9[%c0_16, %c0_17] : memref<1x256xf32, #tpu.memory_space<vmem>>, vector<1x256xf32>
    %20 = vector.broadcast %19 : vector<1x256xf32> to vector<8x256xf32>
    %21 = arith.addf %18, %20 : vector<8x256xf32>
    %22 = vector.extract_strided_slice %21 {offsets = [0, 0], sizes = [8, 128], strides = [1, 1]} : vector<8x256xf32> to vector<8x128xf32>
    %23 = vector.extract_strided_slice %21 {offsets = [0, 128], sizes = [8, 128], strides = [1, 1]} : vector<8x256xf32> to vector<8x128xf32>
    %cst_18 = arith.constant -4.000000e+00 : f32
    %cst_19 = arith.constant 1.500000e+01 : f32
    %24 = vector.broadcast %cst_18 : f32 to vector<8x128xf32>
    %25 = arith.maximumf %24, %23 : vector<8x128xf32>
    %26 = vector.broadcast %cst_19 : f32 to vector<8x128xf32>
    %27 = arith.minimumf %26, %25 : vector<8x128xf32>
    %28 = math.exp %27 : vector<8x128xf32>
    %c0_20 = arith.constant 0 : index
    %c0_21 = arith.constant 0 : index
    %29 = vector.load %arg3[%c0_20, %c0_21] : memref<8x128xf32, #tpu.memory_space<vmem>>, vector<8x128xf32>
    %30 = arith.mulf %28, %29 : vector<8x128xf32>
    %31 = arith.addf %22, %30 : vector<8x128xf32>
    %32 = tpu.concatenate %1, %31 in 1 : vector<8x128xf32>, vector<8x128xf32> -> vector<8x256xf32>
    %33 = arith.truncf %32 : vector<8x256xf32> to vector<8x256xbf16>
    %c0_22 = arith.constant 0 : index
    %c0_23 = arith.constant 0 : index
    %34 = vector.load %arg10[%c0_22, %c0_23] : memref<256x128xbf16, #tpu.memory_space<vmem>>, vector<256x128xbf16>
    %cst_24 = arith.constant dense<0.000000e+00> : vector<8x128xf32>
    %35 = tpu.matmul %33, %34, %cst_24 {dimension_numbers = #tpu.dot_dimension_numbers<[1], [0], [0], [1], [0, 0, 1, 1], [], []>} : vector<8x256xbf16>, vector<256x128xbf16>, vector<8x128xf32> -> vector<8x128xf32>
    %c0_25 = arith.constant 0 : index
    %c0_26 = arith.constant 0 : index
    %36 = vector.load %arg11[%c0_25, %c0_26] : memref<1x128xf32, #tpu.memory_space<vmem>>, vector<1x128xf32>
    %37 = vector.broadcast %36 : vector<1x128xf32> to vector<8x128xf32>
    %38 = arith.addf %35, %37 : vector<8x128xf32>
    %cst_27 = arith.constant 0.000000e+00 : f32
    %39 = vector.broadcast %cst_27 : f32 to vector<8x128xf32>
    %40 = arith.maximumf %38, %39 : vector<8x128xf32>
    %41 = arith.truncf %40 : vector<8x128xf32> to vector<8x128xbf16>
    %c0_28 = arith.constant 0 : index
    %c0_29 = arith.constant 0 : index
    %42 = vector.load %arg12[%c0_28, %c0_29] : memref<128x128xbf16, #tpu.memory_space<vmem>>, vector<128x128xbf16>
    %cst_30 = arith.constant dense<0.000000e+00> : vector<8x128xf32>
    %43 = tpu.matmul %41, %42, %cst_30 {dimension_numbers = #tpu.dot_dimension_numbers<[1], [0], [0], [1], [0, 0, 1, 1], [], []>} : vector<8x128xbf16>, vector<128x128xbf16>, vector<8x128xf32> -> vector<8x128xf32>
    %c0_31 = arith.constant 0 : index
    %c0_32 = arith.constant 0 : index
    %44 = vector.load %arg13[%c0_31, %c0_32] : memref<1x128xf32, #tpu.memory_space<vmem>>, vector<1x128xf32>
    %45 = vector.broadcast %44 : vector<1x128xf32> to vector<8x128xf32>
    %46 = arith.addf %43, %45 : vector<8x128xf32>
    %47 = math.tanh %46 : vector<8x128xf32>
    %cst_33 = arith.constant 1.000000e+00 : f32
    %48 = vector.broadcast %cst_33 : f32 to vector<8x128xf32>
    %49 = arith.mulf %48, %47 : vector<8x128xf32>
    %c0_34 = arith.constant 0 : index
    %c0_35 = arith.constant 0 : index
    %50 = vector.load %arg14[%c0_34, %c0_35] : memref<8x384xf32, #tpu.memory_space<vmem>>, vector<8x128xf32>
    tpu.vector_store %arg14[%c0_34, %c0_35], %49 {strides = array<i32>} : memref<8x384xf32, #tpu.memory_space<vmem>>, vector<8x128xf32>,
    %c0_36 = arith.constant 0 : index
    %c128 = arith.constant 128 : index
    %51 = vector.load %arg14[%c0_36, %c128] : memref<8x384xf32, #tpu.memory_space<vmem>>, vector<8x128xf32>
    tpu.vector_store %arg14[%c0_36, %c128], %22 {strides = array<i32>} : memref<8x384xf32, #tpu.memory_space<vmem>>, vector<8x128xf32>,
    %c0_37 = arith.constant 0 : index
    %c256 = arith.constant 256 : index
    %52 = vector.load %arg14[%c0_37, %c256] : memref<8x384xf32, #tpu.memory_space<vmem>>, vector<8x128xf32>
    tpu.vector_store %arg14[%c0_37, %c256], %28 {strides = array<i32>} : memref<8x384xf32, #tpu.memory_space<vmem>>, vector<8x128xf32>,
    return
  }
  func.func @transform_0(%arg0: i32) -> (i32, i32) {
    %c0_i32 = arith.constant 0 : i32
    %c0_i32_0 = arith.constant 0 : i32
    return %arg0, %c0_i32 : i32, i32
  }
  func.func @transform_1(%arg0: i32) -> (i32, i32) {
    %c0_i32 = arith.constant 0 : i32
    %c0_i32_0 = arith.constant 0 : i32
    return %arg0, %c0_i32 : i32, i32
  }
  func.func @transform_2(%arg0: i32) -> (i32, i32) {
    %c0_i32 = arith.constant 0 : i32
    %c0_i32_0 = arith.constant 0 : i32
    return %arg0, %c0_i32 : i32, i32
  }
  func.func @transform_3(%arg0: i32) -> (i32, i32) {
    %c0_i32 = arith.constant 0 : i32
    %c0_i32_0 = arith.constant 0 : i32
    %c0_i32_1 = arith.constant 0 : i32
    return %c0_i32, %c0_i32_0 : i32, i32
  }
  func.func @transform_4(%arg0: i32) -> (i32, i32) {
    %c0_i32 = arith.constant 0 : i32
    %c0_i32_0 = arith.constant 0 : i32
    %c0_i32_1 = arith.constant 0 : i32
    return %c0_i32, %c0_i32_0 : i32, i32
  }
  func.func @transform_5(%arg0: i32) -> (i32, i32) {
    %c0_i32 = arith.constant 0 : i32
    %c0_i32_0 = arith.constant 0 : i32
    %c0_i32_1 = arith.constant 0 : i32
    return %c0_i32, %c0_i32_0 : i32, i32
  }
  func.func @transform_6(%arg0: i32) -> (i32, i32) {
    %c0_i32 = arith.constant 0 : i32
    %c0_i32_0 = arith.constant 0 : i32
    %c0_i32_1 = arith.constant 0 : i32
    return %c0_i32, %c0_i32_0 : i32, i32
  }
  func.func @transform_7(%arg0: i32) -> (i32, i32) {
    %c0_i32 = arith.constant 0 : i32
    %c0_i32_0 = arith.constant 0 : i32
    %c0_i32_1 = arith.constant 0 : i32
    return %c0_i32, %c0_i32_0 : i32, i32
  }
  func.func @transform_8(%arg0: i32) -> (i32, i32) {
    %c0_i32 = arith.constant 0 : i32
    %c0_i32_0 = arith.constant 0 : i32
    %c0_i32_1 = arith.constant 0 : i32
    return %c0_i32, %c0_i32_0 : i32, i32
  }
  func.func @transform_9(%arg0: i32) -> (i32, i32) {
    %c0_i32 = arith.constant 0 : i32
    %c0_i32_0 = arith.constant 0 : i32
    %c0_i32_1 = arith.constant 0 : i32
    return %c0_i32, %c0_i32_0 : i32, i32
  }
  func.func @transform_10(%arg0: i32) -> (i32, i32) {
    %c0_i32 = arith.constant 0 : i32
    %c0_i32_0 = arith.constant 0 : i32
    %c0_i32_1 = arith.constant 0 : i32
    return %c0_i32, %c0_i32_0 : i32, i32
  }
  func.func @transform_11(%arg0: i32) -> (i32, i32) {
    %c0_i32 = arith.constant 0 : i32
    %c0_i32_0 = arith.constant 0 : i32
    %c0_i32_1 = arith.constant 0 : i32
    return %c0_i32, %c0_i32_0 : i32, i32
  }
  func.func @transform_12(%arg0: i32) -> (i32, i32) {
    %c0_i32 = arith.constant 0 : i32
    %c0_i32_0 = arith.constant 0 : i32
    %c0_i32_1 = arith.constant 0 : i32
    return %c0_i32, %c0_i32_0 : i32, i32
  }
  func.func @transform_13(%arg0: i32) -> (i32, i32) {
    %c0_i32 = arith.constant 0 : i32
    %c0_i32_0 = arith.constant 0 : i32
    return %arg0, %c0_i32 : i32, i32
  }
}

</mosaic_0001>

<llo_original>
// kernel: tpu_custom_call.1
$region0: #{tpu_custom_call.1}
  #allocation0 [shape = 'u32[]', space=smem, size = 0x4, offset = 0x4, fixed_abs, tag = 'smem constant byte address 0x4 - core index']
  #allocation1 [shape = 'u32[144,128]{1,0:T(1,128)}', space=vmem, size = 0x12000, scoped, tag = 'internal scratch']
  %s0 = inlined_call_operand.hbm [shape: f32[8,128], index: 0, kind: input, shape index: {}]
  %s1 = inlined_call_operand.hbm [shape: f32[8,128], index: 1, kind: input, shape index: {}]
  %s2 = inlined_call_operand.hbm [shape: f32[8,128], index: 2, kind: input, shape index: {}]
  %s3 = inlined_call_operand.hbm [shape: bf16[128,128], index: 3, kind: input, shape index: {}]
  %s4 = inlined_call_operand.vmem [shape: f32[1,128], index: 4, kind: input, shape index: {}]
  %s5 = inlined_call_operand.hbm [shape: bf16[128,128], index: 5, kind: input, shape index: {}]
  %s6 = inlined_call_operand.vmem [shape: f32[1,128], index: 6, kind: input, shape index: {}]
  %s7 = inlined_call_operand.hbm [shape: bf16[128,256], index: 7, kind: input, shape index: {}]
  %s8 = inlined_call_operand.vmem [shape: f32[1,256], index: 8, kind: input, shape index: {}]
  %s9 = inlined_call_operand.hbm [shape: bf16[256,128], index: 9, kind: input, shape index: {}]
  %s10 = inlined_call_operand.vmem [shape: f32[1,128], index: 10, kind: input, shape index: {}]
  %s11 = inlined_call_operand.hbm [shape: bf16[128,128], index: 11, kind: input, shape index: {}]
  %s12 = inlined_call_operand.vmem [shape: f32[1,128], index: 12, kind: input, shape index: {}]
  %s13 = inlined_call_operand.hbm [shape: f32[8,384], index: 13, kind: output, shape index: {}]
  %s14 = sld [smem:[#allocation0]]
  $region94: #{tpu_custom_call.1} parent=0
    _
  %s16 = ssub.s32 1, %s14
  %s17 = scalar_select 0, %s16, %s14
  $region1: #{tpu_custom_call.1} parent=0
    #allocation2 [shape = 'u8[4096]{0}', space=vmem, size = 0x1000, scoped, tag = 'input window, operand 0, single buffered']
    #allocation3 [shape = 's32[1]{0}', space=sflag, size = 0x4, scoped, tag = 'scoped memory for tpu_custom_call.1']
    #allocation4 [shape = 's32[1]{0}', space=sflag, size = 0x4, scoped, tag = 'scoped memory for tpu_custom_call.1']
    #allocation5 [shape = 'u8[4096]{0}', space=vmem, size = 0x1000, scoped, tag = 'input window, operand 1, single buffered']
    #allocation6 [shape = 's32[1]{0}', space=sflag, size = 0x4, scoped, tag = 'scoped memory for tpu_custom_call.1']
    #allocation7 [shape = 'u8[4096]{0}', space=vmem, size = 0x1000, scoped, tag = 'input window, operand 2, single buffered']
    #allocation8 [shape = 'u8[32768]{0}', space=vmem, size = 0x8000, scoped, tag = 'input window, operand 3, single buffered']
    #allocation9 [shape = 's32[1]{0}', space=sflag, size = 0x4, scoped, tag = 'scoped memory for tpu_custom_call.1']
    #allocation10 [shape = 'u8[32768]{0}', space=vmem, size = 0x8000, scoped, tag = 'input window, operand 5, single buffered']
    #allocation11 [shape = 'u8[65536]{0}', space=vmem, size = 0x10000, scoped, tag = 'input window, operand 7, single buffered']
    #allocation12 [shape = 's32[1]{0}', space=sflag, size = 0x4, scoped, tag = 'scoped memory for tpu_custom_call.1']
    #allocation13 [shape = 'u8[65536]{0}', space=vmem, size = 0x10000, scoped, tag = 'input window, operand 9, single buffered']
    #allocation14 [shape = 'u8[32768]{0}', space=vmem, size = 0x8000, scoped, tag = 'input window, operand 11, single buffered']
    #allocation15 [shape = 's32[1]{0}', space=sflag, size = 0x4, scoped, tag = 'scoped memory for tpu_custom_call.1']
    #allocation16 [shape = 'u8[12288]{0}', space=vmem, size = 0x3000, scoped, tag = 'output window, operand 0, single buffered']
    %18 = vsyncpa [#allocation3], 0
    %19 = vsyncpa [#allocation6], 0
    %20 = vsyncpa [#allocation9], 0
    %21 = vsyncpa [#allocation12], 0
    %22 = vsyncpa [#allocation15], 0
    %23 = vsyncpa [#allocation4], 0
    // Predicated region
    $region2: #{tpu_custom_call.1} parent=1 // pred_check
      _
    $region3: #{tpu_custom_call.1} parent=1 // pred_check_branch
      %25 = sbr.rel (0) target = $region5
    $region4: #{tpu_custom_call.1} parent=1 // pred_region
      %s27 = ssub.s32 128, 128
      %28 = vsyncadd [#allocation3], %s27
      %s30 = sshll.u32 [#allocation2], 4
      %s31 = int_to_ptr.vmem [resolvable:$true] %s30
      %33 = dma.hbm_to_vmem [thread:$0]  %s0, 128, %s31, [#allocation3]
    $region5: #{tpu_custom_call.1} parent=1 // pred_fallthru
      _
    // Predicated region
    $region6: #{tpu_custom_call.1} parent=1 // pred_check
      _
    $region7: #{tpu_custom_call.1} parent=1 // pred_check_branch
      %35 = sbr.rel (0) target = $region9
    $region8: #{tpu_custom_call.1} parent=1 // pred_region
      %s37 = ssub.s32 128, 128
      %38 = vsyncadd [#allocation6], %s37
      %s40 = sshll.u32 [#allocation5], 4
      %s41 = int_to_ptr.vmem [resolvable:$true] %s40
      %43 = dma.hbm_to_vmem [thread:$0]  %s1, 128, %s41, [#allocation6]
    $region9: #{tpu_custom_call.1} parent=1 // pred_fallthru
      _
    // Predicated region
    $region10: #{tpu_custom_call.1} parent=1 // pred_check
      _
    $region11: #{tpu_custom_call.1} parent=1 // pred_check_branch
      %45 = sbr.rel (0) target = $region13
    $region12: #{tpu_custom_call.1} parent=1 // pred_region
      %s47 = ssub.s32 128, 128
      %48 = vsyncadd [#allocation6], %s47
      %s50 = sshll.u32 [#allocation7], 4
      %s51 = int_to_ptr.vmem [resolvable:$true] %s50
      %53 = dma.hbm_to_vmem [thread:$0]  %s2, 128, %s51, [#allocation6]
    $region13: #{tpu_custom_call.1} parent=1 // pred_fallthru
      _
    // Predicated region
    $region14: #{tpu_custom_call.1} parent=1 // pred_check
      _
    $region15: #{tpu_custom_call.1} parent=1 // pred_check_branch
      %55 = sbr.rel (0) target = $region17
    $region16: #{tpu_custom_call.1} parent=1 // pred_region
      %s57 = ssub.s32 1024, 1024
      %58 = vsyncadd [#allocation9], %s57
      %s59 = sshll.u32 [#allocation8], 4
      %s60 = int_to_ptr.vmem [resolvable:$true] %s59
      %65 = dma.hbm_to_vmem [thread:$0]  %s3, 1024, %s60, [#allocation9], 64, 64, 4
    $region17: #{tpu_custom_call.1} parent=1 // pred_fallthru
      _
    // Predicated region
    $region18: #{tpu_custom_call.1} parent=1 // pred_check
      _
    $region19: #{tpu_custom_call.1} parent=1 // pred_check_branch
      %67 = sbr.rel (0) target = $region21
    $region20: #{tpu_custom_call.1} parent=1 // pred_region
      _
    $region21: #{tpu_custom_call.1} parent=1 // pred_fallthru
      _
    // Predicated region
    $region22: #{tpu_custom_call.1} parent=1 // pred_check
      _
    $region23: #{tpu_custom_call.1} parent=1 // pred_check_branch
      %69 = sbr.rel (0) target = $region25
    $region24: #{tpu_custom_call.1} parent=1 // pred_region
      %s71 = ssub.s32 1024, 1024
      %72 = vsyncadd [#allocation9], %s71
      %s73 = sshll.u32 [#allocation10], 4
      %s74 = int_to_ptr.vmem [resolvable:$true] %s73
      %79 = dma.hbm_to_vmem [thread:$0]  %s5, 1024, %s74, [#allocation9], 64, 64, 4
    $region25: #{tpu_custom_call.1} parent=1 // pred_fallthru
      _
    // Predicated region
    $region26: #{tpu_custom_call.1} parent=1 // pred_check
      _
    $region27: #{tpu_custom_call.1} parent=1 // pred_check_branch
      %81 = sbr.rel (0) target = $region29
    $region28: #{tpu_custom_call.1} parent=1 // pred_region
      _
    $region29: #{tpu_custom_call.1} parent=1 // pred_fallthru
      _
    // Predicated region
    $region30: #{tpu_custom_call.1} parent=1 // pred_check
      _
    $region31: #{tpu_custom_call.1} parent=1 // pred_check_branch
      %83 = sbr.rel (0) target = $region33
    $region32: #{tpu_custom_call.1} parent=1 // pred_region
      %s85 = ssub.s32 2048, 2048
      %86 = vsyncadd [#allocation12], %s85
      %s87 = sshll.u32 [#allocation11], 4
      %s88 = int_to_ptr.vmem [resolvable:$true] %s87
      %93 = dma.hbm_to_vmem [thread:$0]  %s7, 2048, %s88, [#allocation12], 128, 128, 8
    $region33: #{tpu_custom_call.1} parent=1 // pred_fallthru
      _
    // Predicated region
    $region34: #{tpu_custom_call.1} parent=1 // pred_check
      _
    $region35: #{tpu_custom_call.1} parent=1 // pred_check_branch
      %95 = sbr.rel (0) target = $region37
    $region36: #{tpu_custom_call.1} parent=1 // pred_region
      _
    $region37: #{tpu_custom_call.1} parent=1 // pred_fallthru
      _
    // Predicated region
    $region38: #{tpu_custom_call.1} parent=1 // pred_check
      _
    $region39: #{tpu_custom_call.1} parent=1 // pred_check_branch
      %97 = sbr.rel (0) target = $region41
    $region40: #{tpu_custom_call.1} parent=1 // pred_region
      %s99 = ssub.s32 2048, 2048
      %100 = vsyncadd [#allocation12], %s99
      %s101 = sshll.u32 [#allocation13], 4
      %s102 = int_to_ptr.vmem [resolvable:$true] %s101
      %107 = dma.hbm_to_vmem [thread:$0]  %s9, 2048, %s102, [#allocation12], 64, 64, 4
    $region41: #{tpu_custom_call.1} parent=1 // pred_fallthru
      _
    // Predicated region
    $region42: #{tpu_custom_call.1} parent=1 // pred_check
      _
    $region43: #{tpu_custom_call.1} parent=1 // pred_check_branch
      %109 = sbr.rel (0) target = $region45
    $region44: #{tpu_custom_call.1} parent=1 // pred_region
      _
    $region45: #{tpu_custom_call.1} parent=1 // pred_fallthru
      _
    // Predicated region
    $region46: #{tpu_custom_call.1} parent=1 // pred_check
      _
    $region47: #{tpu_custom_call.1} parent=1 // pred_check_branch
      %111 = sbr.rel (0) target = $region49
    $region48: #{tpu_custom_call.1} parent=1 // pred_region
      %s113 = ssub.s32 1024, 1024
      %114 = vsyncadd [#allocation15], %s113
      %s115 = sshll.u32 [#allocation14], 4
      %s116 = int_to_ptr.vmem [resolvable:$true] %s115
      %121 = dma.hbm_to_vmem [thread:$0]  %s11, 1024, %s116, [#allocation15], 64, 64, 4
    $region49: #{tpu_custom_call.1} parent=1 // pred_fallthru
      _
    // Predicated region
    $region50: #{tpu_custom_call.1} parent=1 // pred_check
      _
    $region51: #{tpu_custom_call.1} parent=1 // pred_check_branch
      %123 = sbr.rel (0) target = $region53
    $region52: #{tpu_custom_call.1} parent=1 // pred_region
      _
    $region53: #{tpu_custom_call.1} parent=1 // pred_fallthru
      _
    // Predicated region
    $region54: #{tpu_custom_call.1} parent=1 // pred_check
      _
    $region55: #{tpu_custom_call.1} parent=1 // pred_check_branch
      %125 = sbr.rel (0) target = $region57
    $region56: #{tpu_custom_call.1} parent=1 // pred_region
      %126 = dma.done [#allocation3], 128
    $region57: #{tpu_custom_call.1} parent=1 // pred_fallthru
      _
    // Predicated region
    $region58: #{tpu_custom_call.1} parent=1 // pred_check
      _
    $region59: #{tpu_custom_call.1} parent=1 // pred_check_branch
      %128 = sbr.rel (0) target = $region61
    $region60: #{tpu_custom_call.1} parent=1 // pred_region
      %129 = dma.done [#allocation6], 128
    $region61: #{tpu_custom_call.1} parent=1 // pred_fallthru
      _
    // Predicated region
    $region62: #{tpu_custom_call.1} parent=1 // pred_check
      _
    $region63: #{tpu_custom_call.1} parent=1 // pred_check_branch
      %131 = sbr.rel (0) target = $region65
    $region64: #{tpu_custom_call.1} parent=1 // pred_region
      %132 = dma.done [#allocation6], 128
    $region65: #{tpu_custom_call.1} parent=1 // pred_fallthru
      _
    // Predicated region
    $region66: #{tpu_custom_call.1} parent=1 // pred_check
      _
    $region67: #{tpu_custom_call.1} parent=1 // pred_check_branch
      %134 = sbr.rel (0) target = $region69
    $region68: #{tpu_custom_call.1} parent=1 // pred_region
      %135 = dma.done [#allocation9], 1024
    $region69: #{tpu_custom_call.1} parent=1 // pred_fallthru
      _
    // Predicated region
    $region70: #{tpu_custom_call.1} parent=1 // pred_check
      _
    $region71: #{tpu_custom_call.1} parent=1 // pred_check_branch
      %137 = sbr.rel (0) target = $region73
    $region72: #{tpu_custom_call.1} parent=1 // pred_region
      %138 = dma.done [#allocation9], 1024
    $region73: #{tpu_custom_call.1} parent=1 // pred_fallthru
      _
    // Predicated region
    $region74: #{tpu_custom_call.1} parent=1 // pred_check
      _
    $region75: #{tpu_custom_call.1} parent=1 // pred_check_branch
      %140 = sbr.rel (0) target = $region77
    $region76: #{tpu_custom_call.1} parent=1 // pred_region
      %141 = dma.done [#allocation12], 2048
    $region77: #{tpu_custom_call.1} parent=1 // pred_fallthru
      _
    // Predicated region
    $region78: #{tpu_custom_call.1} parent=1 // pred_check
      _
    $region79: #{tpu_custom_call.1} parent=1 // pred_check_branch
      %143 = sbr.rel (0) target = $region81
    $region80: #{tpu_custom_call.1} parent=1 // pred_region
      %144 = dma.done [#allocation12], 2048
    $region81: #{tpu_custom_call.1} parent=1 // pred_fallthru
      _
    // Predicated region
    $region82: #{tpu_custom_call.1} parent=1 // pred_check
      _
    $region83: #{tpu_custom_call.1} parent=1 // pred_check_branch
      %146 = sbr.rel (0) target = $region85
    $region84: #{tpu_custom_call.1} parent=1 // pred_region
      %147 = dma.done [#allocation15], 1024
    $region85: #{tpu_custom_call.1} parent=1 // pred_fallthru
      _
    %v149 = vld [vmem:[#allocation2] sm:$0xff]
    %v150 = vld [vmem:[#allocation5] sm:$0xff]
    %v151 = vpack.c.bf16 %v149, %v149
    %v152 = vld [vmem:[#allocation8] sm:$0xf]
    %v153 = vld [vmem:[#allocation8 + $0x4] sm:$0xf]
    %v154 = vld [vmem:[#allocation8 + $0x8] sm:$0xf]
    %v155 = vld [vmem:[#allocation8 + $0xc] sm:$0xf]
    %v156 = vld [vmem:[#allocation8 + $0x10] sm:$0xf]
    %v157 = vld [vmem:[#allocation8 + $0x14] sm:$0xf]
    %v158 = vld [vmem:[#allocation8 + $0x18] sm:$0xf]
    %v159 = vld [vmem:[#allocation8 + $0x1c] sm:$0xf]
    %v160 = vld [vmem:[#allocation8 + $0x20] sm:$0xf]
    %v161 = vld [vmem:[#allocation8 + $0x24] sm:$0xf]
    %v162 = vld [vmem:[#allocation8 + $0x28] sm:$0xf]
    %v163 = vld [vmem:[#allocation8 + $0x2c] sm:$0xf]
    %v164 = vld [vmem:[#allocation8 + $0x30] sm:$0xf]
    %v165 = vld [vmem:[#allocation8 + $0x34] sm:$0xf]
    %v166 = vld [vmem:[#allocation8 + $0x38] sm:$0xf]
    %v167 = vld [vmem:[#allocation8 + $0x3c] sm:$0xf]
    %v168 = vld [vmem:[%s4] sm:$0x1]
    %v170 = vlaneseq
    %v171 = vshrl.u32 %v170, 7
    %v172 = vsub.s32 0, %v171
    %v173 = vrot.slane %v168, %v172
    %v191 = vunpack.c.l.b16 %v152
    %v192 = vunpack.c.l.b16 %v153
    %v193 = vunpack.c.l.b16 %v154
    %v194 = vunpack.c.l.b16 %v155
    %v195 = vunpack.c.l.b16 %v156
    %v196 = vunpack.c.l.b16 %v157
    %v197 = vunpack.c.l.b16 %v158
    %v198 = vunpack.c.l.b16 %v159
    %v199 = vunpack.c.l.b16 %v160
    %v200 = vunpack.c.l.b16 %v161
    %v201 = vunpack.c.l.b16 %v162
    %v202 = vunpack.c.l.b16 %v163
    %v203 = vunpack.c.l.b16 %v164
    %v204 = vunpack.c.l.b16 %v165
    %v205 = vunpack.c.l.b16 %v166
    %v206 = vunpack.c.l.b16 %v167
    %v207 = vpack.c.b16 %v192, %v191
    %v208 = vpack.c.b16 %v194, %v193
    %v209 = vpack.c.b16 %v196, %v195
    %v210 = vpack.c.b16 %v198, %v197
    %v211 = vpack.c.b16 %v200, %v199
    %v212 = vpack.c.b16 %v202, %v201
    %v213 = vpack.c.b16 %v204, %v203
    %v214 = vpack.c.b16 %v206, %v205
    %223 = vmatprep.subr.bf16.mxu0 0
    %224 = vmatpush1.bf16.msra.mxu0 %v207
    %225 = vmatprep.subr.bf16.mxu0 0
    %226 = vmatpush1.bf16.msra.mxu0 %v208
    %227 = vmatprep.subr.bf16.mxu0 0
    %228 = vmatpush1.bf16.msra.mxu0 %v209
    %229 = vmatprep.subr.bf16.mxu0 0
    %230 = vmatpush1.bf16.msra.mxu0 %v210
    %231 = vmatprep.subr.bf16.mxu0 0
    %232 = vmatpush1.bf16.msra.mxu0 %v211
    %233 = vmatprep.subr.bf16.mxu0 0
    %234 = vmatpush1.bf16.msra.mxu0 %v212
    %235 = vmatprep.subr.bf16.mxu0 0
    %236 = vmatpush1.bf16.msra.mxu0 %v213
    %237 = vmatprep.subr.bf16.mxu0 0
    %238 = vmatpush1.bf16.msra.mxu0 %v214
    %239 = vmatprep.subr.bf16.mxu0 0
    %240 = vmatpush1.bf16.msra.mxu0 0
    %241 = vmatprep.subr.bf16.mxu0 0
    %242 = vmatpush1.bf16.msra.mxu0 0
    %243 = vmatprep.subr.bf16.mxu0 0
    %244 = vmatpush1.bf16.msra.mxu0 0
    %245 = vmatprep.subr.bf16.mxu0 0
    %246 = vmatpush1.bf16.msra.mxu0 0
    %247 = vmatprep.subr.bf16.mxu0 0
    %248 = vmatpush1.bf16.msra.mxu0 0
    %249 = vmatprep.subr.bf16.mxu0 0
    %250 = vmatpush1.bf16.msra.mxu0 0
    %251 = vmatprep.subr.bf16.mxu0 0
    %252 = vmatpush1.bf16.msra.mxu0 0
    %253 = vmatprep.subr.bf16.mxu0 0
    %254 = vmatpush1.bf16.msra.mxu0 0
    %255 = vmatprep.mubr.bf16.mxu0 0
    %256 = vmatmul.mubr.bf16.gmra.mrb[0].mxu0 %v151
    %v257 = vpop.f32.mrb[0].mxu0
    %v258 = vadd.f32 %v173, %v257
    %v259 = vpop.f32.mrb[0].mxu0
    %v260 = vpop.f32.mrb[0].mxu0
    %v261 = vpop.f32.mrb[0].mxu0
    %262 = vdwg.mxu0
    %v263 = vmax.f32 %v258, 0.0
    %v264 = vpack.c.bf16 %v263, %v263
    %v265 = vld [vmem:[#allocation10] sm:$0xf]
    %v266 = vld [vmem:[#allocation10 + $0x4] sm:$0xf]
    %v267 = vld [vmem:[#allocation10 + $0x8] sm:$0xf]
    %v268 = vld [vmem:[#allocation10 + $0xc] sm:$0xf]
    %v269 = vld [vmem:[#allocation10 + $0x10] sm:$0xf]
    %v270 = vld [vmem:[#allocation10 + $0x14] sm:$0xf]
    %v271 = vld [vmem:[#allocation10 + $0x18] sm:$0xf]
    %v272 = vld [vmem:[#allocation10 + $0x1c] sm:$0xf]
    %v273 = vld [vmem:[#allocation10 + $0x20] sm:$0xf]
    %v274 = vld [vmem:[#allocation10 + $0x24] sm:$0xf]
    %v275 = vld [vmem:[#allocation10 + $0x28] sm:$0xf]
    %v276 = vld [vmem:[#allocation10 + $0x2c] sm:$0xf]
    %v277 = vld [vmem:[#allocation10 + $0x30] sm:$0xf]
    %v278 = vld [vmem:[#allocation10 + $0x34] sm:$0xf]
    %v279 = vld [vmem:[#allocation10 + $0x38] sm:$0xf]
    %v280 = vld [vmem:[#allocation10 + $0x3c] sm:$0xf]
    %v281 = vld [vmem:[%s6] sm:$0x1]
    %v283 = vlaneseq
    %v284 = vshrl.u32 %v283, 7
    %v285 = vsub.s32 0, %v284
    %v286 = vrot.slane %v281, %v285
    %v304 = vunpack.c.l.b16 %v265
    %v305 = vunpack.c.l.b16 %v266
    %v306 = vunpack.c.l.b16 %v267
    %v307 = vunpack.c.l.b16 %v268
    %v308 = vunpack.c.l.b16 %v269
    %v309 = vunpack.c.l.b16 %v270
    %v310 = vunpack.c.l.b16 %v271
    %v311 = vunpack.c.l.b16 %v272
    %v312 = vunpack.c.l.b16 %v273
    %v313 = vunpack.c.l.b16 %v274
    %v314 = vunpack.c.l.b16 %v275
    %v315 = vunpack.c.l.b16 %v276
    %v316 = vunpack.c.l.b16 %v277
    %v317 = vunpack.c.l.b16 %v278
    %v318 = vunpack.c.l.b16 %v279
    %v319 = vunpack.c.l.b16 %v280
    %v320 = vpack.c.b16 %v305, %v304
    %v321 = vpack.c.b16 %v307, %v306
    %v322 = vpack.c.b16 %v309, %v308
    %v323 = vpack.c.b16 %v311, %v310
    %v324 = vpack.c.b16 %v313, %v312
    %v325 = vpack.c.b16 %v315, %v314
    %v326 = vpack.c.b16 %v317, %v316
    %v327 = vpack.c.b16 %v319, %v318
    %336 = vmatprep.subr.bf16.mxu0 0
    %337 = vmatpush1.bf16.msra.mxu0 %v320
    %338 = vmatprep.subr.bf16.mxu0 0
    %339 = vmatpush1.bf16.msra.mxu0 %v321
    %340 = vmatprep.subr.bf16.mxu0 0
    %341 = vmatpush1.bf16.msra.mxu0 %v322
    %342 = vmatprep.subr.bf16.mxu0 0
    %343 = vmatpush1.bf16.msra.mxu0 %v323
    %344 = vmatprep.subr.bf16.mxu0 0
    %345 = vmatpush1.bf16.msra.mxu0 %v324
    %346 = vmatprep.subr.bf16.mxu0 0
    %347 = vmatpush1.bf16.msra.mxu0 %v325
    %348 = vmatprep.subr.bf16.mxu0 0
    %349 = vmatpush1.bf16.msra.mxu0 %v326
    %350 = vmatprep.subr.bf16.mxu0 0
    %351 = vmatpush1.bf16.msra.mxu0 %v327
    %352 = vmatprep.subr.bf16.mxu0 0
    %353 = vmatpush1.bf16.msra.mxu0 0
    %354 = vmatprep.subr.bf16.mxu0 0
    %355 = vmatpush1.bf16.msra.mxu0 0
    %356 = vmatprep.subr.bf16.mxu0 0
    %357 = vmatpush1.bf16.msra.mxu0 0
    %358 = vmatprep.subr.bf16.mxu0 0
    %359 = vmatpush1.bf16.msra.mxu0 0
    %360 = vmatprep.subr.bf16.mxu0 0
    %361 = vmatpush1.bf16.msra.mxu0 0
    %362 = vmatprep.subr.bf16.mxu0 0
    %363 = vmatpush1.bf16.msra.mxu0 0
    %364 = vmatprep.subr.bf16.mxu0 0
    %365 = vmatpush1.bf16.msra.mxu0 0
    %366 = vmatprep.subr.bf16.mxu0 0
    %367 = vmatpush1.bf16.msra.mxu0 0
    %368 = vmatprep.mubr.bf16.mxu0 0
    %369 = vmatmul.mubr.bf16.gmra.mrb[0].mxu0 %v264
    %v370 = vpop.f32.mrb[0].mxu0
    %v371 = vadd.f32 %v286, %v370
    %v372 = vpop.f32.mrb[0].mxu0
    %v373 = vpop.f32.mrb[0].mxu0
    %v374 = vpop.f32.mrb[0].mxu0
    %375 = vdwg.mxu0
    %v376 = vpack.c.bf16 %v371, %v371
    %v377 = vld [vmem:[#allocation11] sm:$0xff]
    %v378 = vld [vmem:[#allocation11 + $0x8] sm:$0xff]
    %v379 = vld [vmem:[#allocation11 + $0x10] sm:$0xff]
    %v380 = vld [vmem:[#allocation11 + $0x18] sm:$0xff]
    %v381 = vld [vmem:[#allocation11 + $0x20] sm:$0xff]
    %v382 = vld [vmem:[#allocation11 + $0x28] sm:$0xff]
    %v383 = vld [vmem:[#allocation11 + $0x30] sm:$0xff]
    %v384 = vld [vmem:[#allocation11 + $0x38] sm:$0xff]
    %v385 = vld [vmem:[#allocation11 + $0x40] sm:$0xff]
    %v386 = vld [vmem:[#allocation11 + $0x48] sm:$0xff]
    %v387 = vld [vmem:[#allocation11 + $0x50] sm:$0xff]
    %v388 = vld [vmem:[#allocation11 + $0x58] sm:$0xff]
    %v389 = vld [vmem:[#allocation11 + $0x60] sm:$0xff]
    %v390 = vld [vmem:[#allocation11 + $0x68] sm:$0xff]
    %v391 = vld [vmem:[#allocation11 + $0x70] sm:$0xff]
    %v392 = vld [vmem:[#allocation11 + $0x78] sm:$0xff]
    %v393 = vld [vmem:[%s8] sm:$0x3]
    %v395 = vlaneseq
    %v396 = vshrl.u32 %v395, 7
    %v397 = vsub.s32 0, %v396
    %v398 = vrot.slane %v393, %v397
    %v399 = vlaneseq
    %v400 = vshrl.u32 %v399, 7
    %v401 = vsub.s32 1, %v400
    %v402 = vrot.slane %v393, %v401
    %v421 = vunpack.c.l.b16 %v377
    %v422 = vunpack.c.h.b16 %v377
    %v423 = vunpack.c.l.b16 %v378
    %v424 = vunpack.c.h.b16 %v378
    %v425 = vunpack.c.l.b16 %v379
    %v426 = vunpack.c.h.b16 %v379
    %v427 = vunpack.c.l.b16 %v380
    %v428 = vunpack.c.h.b16 %v380
    %v429 = vunpack.c.l.b16 %v381
    %v430 = vunpack.c.h.b16 %v381
    %v431 = vunpack.c.l.b16 %v382
    %v432 = vunpack.c.h.b16 %v382
    %v433 = vunpack.c.l.b16 %v383
    %v434 = vunpack.c.h.b16 %v383
    %v435 = vunpack.c.l.b16 %v384
    %v436 = vunpack.c.h.b16 %v384
    %v437 = vunpack.c.l.b16 %v385
    %v438 = vunpack.c.h.b16 %v385
    %v439 = vunpack.c.l.b16 %v386
    %v440 = vunpack.c.h.b16 %v386
    %v441 = vunpack.c.l.b16 %v387
    %v442 = vunpack.c.h.b16 %v387
    %v443 = vunpack.c.l.b16 %v388
    %v444 = vunpack.c.h.b16 %v388
    %v445 = vunpack.c.l.b16 %v389
    %v446 = vunpack.c.h.b16 %v389
    %v447 = vunpack.c.l.b16 %v390
    %v448 = vunpack.c.h.b16 %v390
    %v449 = vunpack.c.l.b16 %v391
    %v450 = vunpack.c.h.b16 %v391
    %v451 = vunpack.c.l.b16 %v392
    %v452 = vunpack.c.h.b16 %v392
    %v453 = vpack.c.b16 %v423, %v421
    %v454 = vpack.c.b16 %v424, %v422
    %v455 = vpack.c.b16 %v427, %v425
    %v456 = vpack.c.b16 %v428, %v426
    %v457 = vpack.c.b16 %v431, %v429
    %v458 = vpack.c.b16 %v432, %v430
    %v459 = vpack.c.b16 %v435, %v433
    %v460 = vpack.c.b16 %v436, %v434
    %v461 = vpack.c.b16 %v439, %v437
    %v462 = vpack.c.b16 %v440, %v438
    %v463 = vpack.c.b16 %v443, %v441
    %v464 = vpack.c.b16 %v444, %v442
    %v465 = vpack.c.b16 %v447, %v445
    %v466 = vpack.c.b16 %v448, %v446
    %v467 = vpack.c.b16 %v451, %v449
    %v468 = vpack.c.b16 %v452, %v450
    %485 = vmatprep.subr.bf16.mxu0 %v454
    %486 = vmatpush1.bf16.msra.mxu0 %v453
    %487 = vmatprep.subr.bf16.mxu0 %v456
    %488 = vmatpush1.bf16.msra.mxu0 %v455
    %489 = vmatprep.subr.bf16.mxu0 %v458
    %490 = vmatpush1.bf16.msra.mxu0 %v457
    %491 = vmatprep.subr.bf16.mxu0 %v460
    %492 = vmatpush1.bf16.msra.mxu0 %v459
    %493 = vmatprep.subr.bf16.mxu0 %v462
    %494 = vmatpush1.bf16.msra.mxu0 %v461
    %495 = vmatprep.subr.bf16.mxu0 %v464
    %496 = vmatpush1.bf16.msra.mxu0 %v463
    %497 = vmatprep.subr.bf16.mxu0 %v466
    %498 = vmatpush1.bf16.msra.mxu0 %v465
    %499 = vmatprep.subr.bf16.mxu0 %v468
    %500 = vmatpush1.bf16.msra.mxu0 %v467
    %501 = vmatprep.subr.bf16.mxu0 0
    %502 = vmatpush1.bf16.msra.mxu0 0
    %503 = vmatprep.subr.bf16.mxu0 0
    %504 = vmatpush1.bf16.msra.mxu0 0
    %505 = vmatprep.subr.bf16.mxu0 0
    %506 = vmatpush1.bf16.msra.mxu0 0
    %507 = vmatprep.subr.bf16.mxu0 0
    %508 = vmatpush1.bf16.msra.mxu0 0
    %509 = vmatprep.subr.bf16.mxu0 0
    %510 = vmatpush1.bf16.msra.mxu0 0
    %511 = vmatprep.subr.bf16.mxu0 0
    %512 = vmatpush1.bf16.msra.mxu0 0
    %513 = vmatprep.subr.bf16.mxu0 0
    %514 = vmatpush1.bf16.msra.mxu0 0
    %515 = vmatprep.subr.bf16.mxu0 0
    %516 = vmatpush1.bf16.msra.mxu0 0
    %517 = vmatprep.mubr.bf16.mxu0 0
    %518 = vmatmul.mubr.bf16.gmra.mrb[0].mxu0 %v376
    %v519 = vpop.f32.mrb[0].mxu0
    %v520 = vadd.f32 %v398, %v519
    %v521 = vpop.f32.mrb[0].mxu0
    %v522 = vadd.f32 %v402, %v521
    %v523 = vpop.f32.mrb[0].mxu0
    %v524 = vpop.f32.mrb[0].mxu0
    %525 = vdwg.mxu0
    %v526 = vmax.f32 %v522, -4.0
    %v527 = vmin.f32 %v526, 15.0
    %v528 = vmul.f32 %v527, 1.442695
    %v529 = vpow.pop %v528
    %v530 = vld [vmem:[#allocation7] sm:$0xff]
    %v531 = vmul.f32 %v529, %v530
    %v532 = vadd.f32 %v520, %v531
    %v533 = vpack.c.bf16 %v150, %v150
    %v534 = vpack.c.bf16 %v532, %v532
    %v535 = vld [vmem:[#allocation13] sm:$0xf]
    %v536 = vld [vmem:[#allocation13 + $0x4] sm:$0xf]
    %v537 = vld [vmem:[#allocation13 + $0x8] sm:$0xf]
    %v538 = vld [vmem:[#allocation13 + $0xc] sm:$0xf]
    %v539 = vld [vmem:[#allocation13 + $0x10] sm:$0xf]
    %v540 = vld [vmem:[#allocation13 + $0x14] sm:$0xf]
    %v541 = vld [vmem:[#allocation13 + $0x18] sm:$0xf]
    %v542 = vld [vmem:[#allocation13 + $0x1c] sm:$0xf]
    %v543 = vld [vmem:[#allocation13 + $0x20] sm:$0xf]
    %v544 = vld [vmem:[#allocation13 + $0x24] sm:$0xf]
    %v545 = vld [vmem:[#allocation13 + $0x28] sm:$0xf]
    %v546 = vld [vmem:[#allocation13 + $0x2c] sm:$0xf]
    %v547 = vld [vmem:[#allocation13 + $0x30] sm:$0xf]
    %v548 = vld [vmem:[#allocation13 + $0x34] sm:$0xf]
    %v549 = vld [vmem:[#allocation13 + $0x38] sm:$0xf]
    %v550 = vld [vmem:[#allocation13 + $0x3c] sm:$0xf]
    %v551 = vld [vmem:[#allocation13 + $0x40] sm:$0xf]
    %v552 = vld [vmem:[#allocation13 + $0x44] sm:$0xf]
    %v553 = vld [vmem:[#allocation13 + $0x48] sm:$0xf]
    %v554 = vld [vmem:[#allocation13 + $0x4c] sm:$0xf]
    %v555 = vld [vmem:[#allocation13 + $0x50] sm:$0xf]
    %v556 = vld [vmem:[#allocation13 + $0x54] sm:$0xf]
    %v557 = vld [vmem:[#allocation13 + $0x58] sm:$0xf]
    %v558 = vld [vmem:[#allocation13 + $0x5c] sm:$0xf]
    %v559 = vld [vmem:[#allocation13 + $0x60] sm:$0xf]
    %v560 = vld [vmem:[#allocation13 + $0x64] sm:$0xf]
    %v561 = vld [vmem:[#allocation13 + $0x68] sm:$0xf]
    %v562 = vld [vmem:[#allocation13 + $0x6c] sm:$0xf]
    %v563 = vld [vmem:[#allocation13 + $0x70] sm:$0xf]
    %v564 = vld [vmem:[#allocation13 + $0x74] sm:$0xf]
    %v565 = vld [vmem:[#allocation13 + $0x78] sm:$0xf]
    %v566 = vld [vmem:[#allocation13 + $0x7c] sm:$0xf]
    %v567 = vld [vmem:[%s10] sm:$0x1]
    %v569 = vlaneseq
    %v570 = vshrl.u32 %v569, 7
    %v571 = vsub.s32 0, %v570
    %v572 = vrot.slane %v567, %v571
    %v606 = vunpack.c.l.b16 %v535
    %v607 = vunpack.c.l.b16 %v536
    %v608 = vunpack.c.l.b16 %v537
    %v609 = vunpack.c.l.b16 %v538
    %v610 = vunpack.c.l.b16 %v539
    %v611 = vunpack.c.l.b16 %v540
    %v612 = vunpack.c.l.b16 %v541
    %v613 = vunpack.c.l.b16 %v542
    %v614 = vunpack.c.l.b16 %v543
    %v615 = vunpack.c.l.b16 %v544
    %v616 = vunpack.c.l.b16 %v545
    %v617 = vunpack.c.l.b16 %v546
    %v618 = vunpack.c.l.b16 %v547
    %v619 = vunpack.c.l.b16 %v548
    %v620 = vunpack.c.l.b16 %v549
    %v621 = vunpack.c.l.b16 %v550
    %v622 = vunpack.c.l.b16 %v551
    %v623 = vunpack.c.l.b16 %v552
    %v624 = vunpack.c.l.b16 %v553
    %v625 = vunpack.c.l.b16 %v554
    %v626 = vunpack.c.l.b16 %v555
    %v627 = vunpack.c.l.b16 %v556
    %v628 = vunpack.c.l.b16 %v557
    %v629 = vunpack.c.l.b16 %v558
    %v630 = vunpack.c.l.b16 %v559
    %v631 = vunpack.c.l.b16 %v560
    %v632 = vunpack.c.l.b16 %v561
    %v633 = vunpack.c.l.b16 %v562
    %v634 = vunpack.c.l.b16 %v563
    %v635 = vunpack.c.l.b16 %v564
    %v636 = vunpack.c.l.b16 %v565
    %v637 = vunpack.c.l.b16 %v566
    %v638 = vpack.c.b16 %v607, %v606
    %v639 = vpack.c.b16 %v609, %v608
    %v640 = vpack.c.b16 %v611, %v610
    %v641 = vpack.c.b16 %v613, %v612
    %v642 = vpack.c.b16 %v615, %v614
    %v643 = vpack.c.b16 %v617, %v616
    %v644 = vpack.c.b16 %v619, %v618
    %v645 = vpack.c.b16 %v621, %v620
    %v646 = vpack.c.b16 %v623, %v622
    %v647 = vpack.c.b16 %v625, %v624
    %v648 = vpack.c.b16 %v627, %v626
    %v649 = vpack.c.b16 %v629, %v628
    %v650 = vpack.c.b16 %v631, %v630
    %v651 = vpack.c.b16 %v633, %v632
    %v652 = vpack.c.b16 %v635, %v634
    %v653 = vpack.c.b16 %v637, %v636
    %670 = vmatprep.subr.bf16.mxu0 0
    %671 = vmatpush1.bf16.msra.mxu0 %v638
    %672 = vmatprep.subr.bf16.mxu0 0
    %673 = vmatpush1.bf16.msra.mxu0 %v639
    %674 = vmatprep.subr.bf16.mxu0 0
    %675 = vmatpush1.bf16.msra.mxu0 %v640
    %676 = vmatprep.subr.bf16.mxu0 0
    %677 = vmatpush1.bf16.msra.mxu0 %v641
    %678 = vmatprep.subr.bf16.mxu0 0
    %679 = vmatpush1.bf16.msra.mxu0 %v642
    %680 = vmatprep.subr.bf16.mxu0 0
    %681 = vmatpush1.bf16.msra.mxu0 %v643
    %682 = vmatprep.subr.bf16.mxu0 0
    %683 = vmatpush1.bf16.msra.mxu0 %v644
    %684 = vmatprep.subr.bf16.mxu0 0
    %685 = vmatpush1.bf16.msra.mxu0 %v645
    %686 = vmatprep.subr.bf16.mxu0 0
    %687 = vmatpush1.bf16.msra.mxu0 %v646
    %688 = vmatprep.subr.bf16.mxu0 0
    %689 = vmatpush1.bf16.msra.mxu0 %v647
    %690 = vmatprep.subr.bf16.mxu0 0
    %691 = vmatpush1.bf16.msra.mxu0 %v648
    %692 = vmatprep.subr.bf16.mxu0 0
    %693 = vmatpush1.bf16.msra.mxu0 %v649
    %694 = vmatprep.subr.bf16.mxu0 0
    %695 = vmatpush1.bf16.msra.mxu0 %v650
    %696 = vmatprep.subr.bf16.mxu0 0
    %697 = vmatpush1.bf16.msra.mxu0 %v651
    %698 = vmatprep.subr.bf16.mxu0 0
    %699 = vmatpush1.bf16.msra.mxu0 %v652
    %700 = vmatprep.subr.bf16.mxu0 0
    %701 = vmatpush1.bf16.msra.mxu0 %v653
    %702 = vmatprep.mubr.bf16.mxu0 %v534
    %703 = vmatmul.mubr.bf16.gmra.mrb[0].mxu0 %v533
    %v704 = vpop.f32.mrb[0].mxu0
    %v705 = vadd.f32 %v572, %v704
    %v706 = vpop.f32.mrb[0].mxu0
    %v707 = vpop.f32.mrb[0].mxu0
    %v708 = vpop.f32.mrb[0].mxu0
    %709 = vdwg.mxu0
    %v710 = vmax.f32 %v705, 0.0
    %v711 = vpack.c.bf16 %v710, %v710
    %v712 = vld [vmem:[#allocation14] sm:$0xf]
    %v713 = vld [vmem:[#allocation14 + $0x4] sm:$0xf]
    %v714 = vld [vmem:[#allocation14 + $0x8] sm:$0xf]
    %v715 = vld [vmem:[#allocation14 + $0xc] sm:$0xf]
    %v716 = vld [vmem:[#allocation14 + $0x10] sm:$0xf]
    %v717 = vld [vmem:[#allocation14 + $0x14] sm:$0xf]
    %v718 = vld [vmem:[#allocation14 + $0x18] sm:$0xf]
    %v719 = vld [vmem:[#allocation14 + $0x1c] sm:$0xf]
    %v720 = vld [vmem:[#allocation14 + $0x20] sm:$0xf]
    %v721 = vld [vmem:[#allocation14 + $0x24] sm:$0xf]
    %v722 = vld [vmem:[#allocation14 + $0x28] sm:$0xf]
    %v723 = vld [vmem:[#allocation14 + $0x2c] sm:$0xf]
    %v724 = vld [vmem:[#allocation14 + $0x30] sm:$0xf]
    %v725 = vld [vmem:[#allocation14 + $0x34] sm:$0xf]
    %v726 = vld [vmem:[#allocation14 + $0x38] sm:$0xf]
    %v727 = vld [vmem:[#allocation14 + $0x3c] sm:$0xf]
    %v728 = vld [vmem:[%s12] sm:$0x1]
    %v730 = vlaneseq
    %v731 = vshrl.u32 %v730, 7
    %v732 = vsub.s32 0, %v731
    %v733 = vrot.slane %v728, %v732
    %v751 = vunpack.c.l.b16 %v712
    %v752 = vunpack.c.l.b16 %v713
    %v753 = vunpack.c.l.b16 %v714
    %v754 = vunpack.c.l.b16 %v715
    %v755 = vunpack.c.l.b16 %v716
    %v756 = vunpack.c.l.b16 %v717
    %v757 = vunpack.c.l.b16 %v718
    %v758 = vunpack.c.l.b16 %v719
    %v759 = vunpack.c.l.b16 %v720
    %v760 = vunpack.c.l.b16 %v721
    %v761 = vunpack.c.l.b16 %v722
    %v762 = vunpack.c.l.b16 %v723
    %v763 = vunpack.c.l.b16 %v724
    %v764 = vunpack.c.l.b16 %v725
    %v765 = vunpack.c.l.b16 %v726
    %v766 = vunpack.c.l.b16 %v727
    %v767 = vpack.c.b16 %v752, %v751
    %v768 = vpack.c.b16 %v754, %v753
    %v769 = vpack.c.b16 %v756, %v755
    %v770 = vpack.c.b16 %v758, %v757
    %v771 = vpack.c.b16 %v760, %v759
    %v772 = vpack.c.b16 %v762, %v761
    %v773 = vpack.c.b16 %v764, %v763
    %v774 = vpack.c.b16 %v766, %v765
    %783 = vmatprep.subr.bf16.mxu0 0
    %784 = vmatpush1.bf16.msra.mxu0 %v767
    %785 = vmatprep.subr.bf16.mxu0 0
    %786 = vmatpush1.bf16.msra.mxu0 %v768
    %787 = vmatprep.subr.bf16.mxu0 0
    %788 = vmatpush1.bf16.msra.mxu0 %v769
    %789 = vmatprep.subr.bf16.mxu0 0
    %790 = vmatpush1.bf16.msra.mxu0 %v770
    %791 = vmatprep.subr.bf16.mxu0 0
    %792 = vmatpush1.bf16.msra.mxu0 %v771
    %793 = vmatprep.subr.bf16.mxu0 0
    %794 = vmatpush1.bf16.msra.mxu0 %v772
    %795 = vmatprep.subr.bf16.mxu0 0
    %796 = vmatpush1.bf16.msra.mxu0 %v773
    %797 = vmatprep.subr.bf16.mxu0 0
    %798 = vmatpush1.bf16.msra.mxu0 %v774
    %799 = vmatprep.subr.bf16.mxu0 0
    %800 = vmatpush1.bf16.msra.mxu0 0
    %801 = vmatprep.subr.bf16.mxu0 0
    %802 = vmatpush1.bf16.msra.mxu0 0
    %803 = vmatprep.subr.bf16.mxu0 0
    %804 = vmatpush1.bf16.msra.mxu0 0
    %805 = vmatprep.subr.bf16.mxu0 0
    %806 = vmatpush1.bf16.msra.mxu0 0
    %807 = vmatprep.subr.bf16.mxu0 0
    %808 = vmatpush1.bf16.msra.mxu0 0
    %809 = vmatprep.subr.bf16.mxu0 0
    %810 = vmatpush1.bf16.msra.mxu0 0
    %811 = vmatprep.subr.bf16.mxu0 0
    %812 = vmatpush1.bf16.msra.mxu0 0
    %813 = vmatprep.subr.bf16.mxu0 0
    %814 = vmatpush1.bf16.msra.mxu0 0
    %815 = vmatprep.mubr.bf16.mxu0 0
    %816 = vmatmul.mubr.bf16.gmra.mrb[0].mxu0 %v711
    %v817 = vpop.f32.mrb[0].mxu0
    %v818 = vadd.f32 %v733, %v817
    %v819 = vpop.f32.mrb[0].mxu0
    %v820 = vpop.f32.mrb[0].mxu0
    %v821 = vpop.f32.mrb[0].mxu0
    %822 = vdwg.mxu0
    %v823 = vtanh.pop %v818
    %824 = vst [vmem:[#allocation16] sm:$0xff] %v823
    %825 = vst [vmem:[#allocation16 + $0x8] sm:$0xff] %v520
    %826 = vst [vmem:[#allocation16 + $0x10] sm:$0xff] %v529
    // Predicated region
    $region86: #{tpu_custom_call.1} parent=1 // pred_check
      _
    $region87: #{tpu_custom_call.1} parent=1 // pred_check_branch
      %828 = sbr.rel (0) target = $region89
    $region88: #{tpu_custom_call.1} parent=1 // pred_region
      %s830 = ssub.s32 384, 384
      %831 = vsyncadd [#allocation4], %s830
      %s833 = sshll.u32 [#allocation16], 4
      %s834 = int_to_ptr.vmem [resolvable:$true] %s833
      %836 = dma.vmem_to_hbm [thread:$0]  %s834, 384, %s13, [#allocation4]
    $region89: #{tpu_custom_call.1} parent=1 // pred_fallthru
      _
    // Predicated region
    $region90: #{tpu_custom_call.1} parent=1 // pred_check
      _
    $region91: #{tpu_custom_call.1} parent=1 // pred_check_branch
      %838 = sbr.rel (0) target = $region93
    $region92: #{tpu_custom_call.1} parent=1 // pred_region
      %839 = dma.done [#allocation4], 384
    $region93: #{tpu_custom_call.1} parent=1 // pred_fallthru
      _
    %840 = vsyncpa [#allocation3], 1
    %841 = vsyncpa [#allocation6], 1
    %842 = vsyncpa [#allocation9], 1
    %843 = vsyncpa [#allocation12], 1
    %844 = vsyncpa [#allocation15], 1
    %845 = vsyncpa [#allocation4], 1

// kernel: tpu_custom_call.1
$region0: #{tpu_custom_call.1}
  #allocation0 [shape = 'u32[]', space=smem, size = 0x4, offset = 0x4, fixed_abs, tag = 'smem constant byte address 0x4 - core index']
  #allocation1 [shape = 'u32[144,128]{1,0:T(1,128)}', space=vmem, size = 0x12000, scoped, tag = 'internal scratch']
  %s0 = inlined_call_operand.hbm [shape: f32[8,128], index: 0, kind: input, shape index: {}]
  %s1 = inlined_call_operand.hbm [shape: f32[8,128], index: 1, kind: input, shape index: {}]
  %s2 = inlined_call_operand.hbm [shape: f32[8,128], index: 2, kind: input, shape index: {}]
  %s3 = inlined_call_operand.hbm [shape: bf16[128,128], index: 3, kind: input, shape index: {}]
  %s4 = inlined_call_operand.vmem [shape: f32[1,128], index: 4, kind: input, shape index: {}]
  %s5 = inlined_call_operand.hbm [shape: bf16[128,128], index: 5, kind: input, shape index: {}]
  %s6 = inlined_call_operand.vmem [shape: f32[1,128], index: 6, kind: input, shape index: {}]
  %s7 = inlined_call_operand.hbm [shape: bf16[128,256], index: 7, kind: input, shape index: {}]
  %s8 = inlined_call_operand.vmem [shape: f32[1,256], index: 8, kind: input, shape index: {}]
  %s9 = inlined_call_operand.hbm [shape: bf16[256,128], index: 9, kind: input, shape index: {}]
  %s10 = inlined_call_operand.vmem [shape: f32[1,128], index: 10, kind: input, shape index: {}]
  %s11 = inlined_call_operand.hbm [shape: bf16[128,128], index: 11, kind: input, shape index: {}]
  %s12 = inlined_call_operand.vmem [shape: f32[1,128], index: 12, kind: input, shape index: {}]
  %s13 = inlined_call_operand.hbm [shape: f32[8,384], index: 13, kind: output, shape index: {}]
  %s14 = sld [smem:[#allocation0]]
  $region94: #{tpu_custom_call.1} parent=0
    _
  %s16 = ssub.s32 1, %s14
  %s17 = scalar_select 0, %s16, %s14
  $region1: #{tpu_custom_call.1} parent=0
    #allocation2 [shape = 'u8[4096]{0}', space=vmem, size = 0x1000, scoped, tag = 'input window, operand 0, single buffered']
    #allocation3 [shape = 's32[1]{0}', space=sflag, size = 0x4, scoped, tag = 'scoped memory for tpu_custom_call.1']
    #allocation4 [shape = 's32[1]{0}', space=sflag, size = 0x4, scoped, tag = 'scoped memory for tpu_custom_call.1']
    #allocation5 [shape = 'u8[4096]{0}', space=vmem, size = 0x1000, scoped, tag = 'input window, operand 1, single buffered']
    #allocation6 [shape = 's32[1]{0}', space=sflag, size = 0x4, scoped, tag = 'scoped memory for tpu_custom_call.1']
    #allocation7 [shape = 'u8[4096]{0}', space=vmem, size = 0x1000, scoped, tag = 'input window, operand 2, single buffered']
    #allocation8 [shape = 'u8[32768]{0}', space=vmem, size = 0x8000, scoped, tag = 'input window, operand 3, single buffered']
    #allocation9 [shape = 's32[1]{0}', space=sflag, size = 0x4, scoped, tag = 'scoped memory for tpu_custom_call.1']
    #allocation10 [shape = 'u8[32768]{0}', space=vmem, size = 0x8000, scoped, tag = 'input window, operand 5, single buffered']
    #allocation11 [shape = 'u8[65536]{0}', space=vmem, size = 0x10000, scoped, tag = 'input window, operand 7, single buffered']
    #allocation12 [shape = 's32[1]{0}', space=sflag, size = 0x4, scoped, tag = 'scoped memory for tpu_custom_call.1']
    #allocation13 [shape = 'u8[65536]{0}', space=vmem, size = 0x10000, scoped, tag = 'input window, operand 9, single buffered']
    #allocation14 [shape = 'u8[32768]{0}', space=vmem, size = 0x8000, scoped, tag = 'input window, operand 11, single buffered']
    #allocation15 [shape = 's32[1]{0}', space=sflag, size = 0x4, scoped, tag = 'scoped memory for tpu_custom_call.1']
    #allocation16 [shape = 'u8[12288]{0}', space=vmem, size = 0x3000, scoped, tag = 'output window, operand 0, single buffered']
    %18 = vsyncpa [#allocation3], 0
    %19 = vsyncpa [#allocation6], 0
    %20 = vsyncpa [#allocation9], 0
    %21 = vsyncpa [#allocation12], 0
    %22 = vsyncpa [#allocation15], 0
    %23 = vsyncpa [#allocation4], 0
    // Predicated region
    $region2: #{tpu_custom_call.1} parent=1 // pred_check
      _
    $region3: #{tpu_custom_call.1} parent=1 // pred_check_branch
      %25 = sbr.rel (0) target = $region5
    $region4: #{tpu_custom_call.1} parent=1 // pred_region
      %s27 = ssub.s32 128, 128
      %28 = vsyncadd [#allocation3], %s27
      %s30 = sshll.u32 [#allocation2], 4
      %s31 = int_to_ptr.vmem [resolvable:$true] %s30
      %33 = dma.hbm_to_vmem [thread:$0]  %s0, 128, %s31, [#allocation3]
    $region5: #{tpu_custom_call.1} parent=1 // pred_fallthru
      _
    // Predicated region
    $region6: #{tpu_custom_call.1} parent=1 // pred_check
      _
    $region7: #{tpu_custom_call.1} parent=1 // pred_check_branch
      %35 = sbr.rel (0) target = $region9
    $region8: #{tpu_custom_call.1} parent=1 // pred_region
      %s37 = ssub.s32 128, 128
      %38 = vsyncadd [#allocation6], %s37
      %s40 = sshll.u32 [#allocation5], 4
      %s41 = int_to_ptr.vmem [resolvable:$true] %s40
      %43 = dma.hbm_to_vmem [thread:$0]  %s1, 128, %s41, [#allocation6]
    $region9: #{tpu_custom_call.1} parent=1 // pred_fallthru
      _
    // Predicated region
    $region10: #{tpu_custom_call.1} parent=1 // pred_check
      _
    $region11: #{tpu_custom_call.1} parent=1 // pred_check_branch
      %45 = sbr.rel (0) target = $region13
    $region12: #{tpu_custom_call.1} parent=1 // pred_region
      %s47 = ssub.s32 128, 128
      %48 = vsyncadd [#allocation6], %s47
      %s50 = sshll.u32 [#allocation7], 4
      %s51 = int_to_ptr.vmem [resolvable:$true] %s50
      %53 = dma.hbm_to_vmem [thread:$0]  %s2, 128, %s51, [#allocation6]
    $region13: #{tpu_custom_call.1} parent=1 // pred_fallthru
      _
    // Predicated region
    $region14: #{tpu_custom_call.1} parent=1 // pred_check
      _
    $region15: #{tpu_custom_call.1} parent=1 // pred_check_branch
      %55 = sbr.rel (0) target = $region17
    $region16: #{tpu_custom_call.1} parent=1 // pred_region
      %s57 = ssub.s32 1024, 1024
      %58 = vsyncadd [#allocation9], %s57
      %s59 = sshll.u32 [#allocation8], 4
      %s60 = int_to_ptr.vmem [resolvable:$true] %s59
      %65 = dma.hbm_to_vmem [thread:$0]  %s3, 1024, %s60, [#allocation9], 64, 64, 4
    $region17: #{tpu_custom_call.1} parent=1 // pred_fallthru
      _
    // Predicated region
    $region18: #{tpu_custom_call.1} parent=1 // pred_check
      _
    $region19: #{tpu_custom_call.1} parent=1 // pred_check_branch
      %67 = sbr.rel (0) target = $region21
    $region20: #{tpu_custom_call.1} parent=1 // pred_region
      _
    $region21: #{tpu_custom_call.1} parent=1 // pred_fallthru
      _
    // Predicated region
    $region22: #{tpu_custom_call.1} parent=1 // pred_check
      _
    $region23: #{tpu_custom_call.1} parent=1 // pred_check_branch
      %69 = sbr.rel (0) target = $region25
    $region24: #{tpu_custom_call.1} parent=1 // pred_region
      %s71 = ssub.s32 1024, 1024
      %72 = vsyncadd [#allocation9], %s71
      %s73 = sshll.u32 [#allocation10], 4
      %s74 = int_to_ptr.vmem [resolvable:$true] %s73
      %79 = dma.hbm_to_vmem [thread:$0]  %s5, 1024, %s74, [#allocation9], 64, 64, 4
    $region25: #{tpu_custom_call.1} parent=1 // pred_fallthru
      _
    // Predicated region
    $region26: #{tpu_custom_call.1} parent=1 // pred_check
      _
    $region27: #{tpu_custom_call.1} parent=1 // pred_check_branch
      %81 = sbr.rel (0) target = $region29
    $region28: #{tpu_custom_call.1} parent=1 // pred_region
      _
    $region29: #{tpu_custom_call.1} parent=1 // pred_fallthru
      _
    // Predicated region
    $region30: #{tpu_custom_call.1} parent=1 // pred_check
      _
    $region31: #{tpu_custom_call.1} parent=1 // pred_check_branch
      %83 = sbr.rel (0) target = $region33
    $region32: #{tpu_custom_call.1} parent=1 // pred_region
      %s85 = ssub.s32 2048, 2048
      %86 = vsyncadd [#allocation12], %s85
      %s87 = sshll.u32 [#allocation11], 4
      %s88 = int_to_ptr.vmem [resolvable:$true] %s87
      %93 = dma.hbm_to_vmem [thread:$0]  %s7, 2048, %s88, [#allocation12], 128, 128, 8
    $region33: #{tpu_custom_call.1} parent=1 // pred_fallthru
      _
    // Predicated region
    $region34: #{tpu_custom_call.1} parent=1 // pred_check
      _
    $region35: #{tpu_custom_call.1} parent=1 // pred_check_branch
      %95 = sbr.rel (0) target = $region37
    $region36: #{tpu_custom_call.1} parent=1 // pred_region
      _
    $region37: #{tpu_custom_call.1} parent=1 // pred_fallthru
      _
    // Predicated region
    $region38: #{tpu_custom_call.1} parent=1 // pred_check
      _
    $region39: #{tpu_custom_call.1} parent=1 // pred_check_branch
      %97 = sbr.rel (0) target = $region41
    $region40: #{tpu_custom_call.1} parent=1 // pred_region
      %s99 = ssub.s32 2048, 2048
      %100 = vsyncadd [#allocation12], %s99
      %s101 = sshll.u32 [#allocation13], 4
      %s102 = int_to_ptr.vmem [resolvable:$true] %s101
      %107 = dma.hbm_to_vmem [thread:$0]  %s9, 2048, %s102, [#allocation12], 64, 64, 4
    $region41: #{tpu_custom_call.1} parent=1 // pred_fallthru
      _
    // Predicated region
    $region42: #{tpu_custom_call.1} parent=1 // pred_check
      _
    $region43: #{tpu_custom_call.1} parent=1 // pred_check_branch
      %109 = sbr.rel (0) target = $region45
    $region44: #{tpu_custom_call.1} parent=1 // pred_region
      _
    $region45: #{tpu_custom_call.1} parent=1 // pred_fallthru
      _
    // Predicated region
    $region46: #{tpu_custom_call.1} parent=1 // pred_check
      _
    $region47: #{tpu_custom_call.1} parent=1 // pred_check_branch
      %111 = sbr.rel (0) target = $region49
    $region48: #{tpu_custom_call.1} parent=1 // pred_region
      %s113 = ssub.s32 1024, 1024
      %114 = vsyncadd [#allocation15], %s113
      %s115 = sshll.u32 [#allocation14], 4
      %s116 = int_to_ptr.vmem [resolvable:$true] %s115
      %121 = dma.hbm_to_vmem [thread:$0]  %s11, 1024, %s116, [#allocation15], 64, 64, 4
    $region49: #{tpu_custom_call.1} parent=1 // pred_fallthru
      _
    // Predicated region
    $region50: #{tpu_custom_call.1} parent=1 // pred_check
      _
    $region51: #{tpu_custom_call.1} parent=1 // pred_check_branch
      %123 = sbr.rel (0) target = $region53
    $region52: #{tpu_custom_call.1} parent=1 // pred_region
      _
    $region53: #{tpu_custom_call.1} parent=1 // pred_fallthru
      _
    // Predicated region
    $region54: #{tpu_custom_call.1} parent=1 // pred_check
      _
    $region55: #{tpu_custom_call.1} parent=1 // pred_check_branch
      %125 = sbr.rel (0) target = $region57
    $region56: #{tpu_custom_call.1} parent=1 // pred_region
      %126 = dma.done [#allocation3], 128
    $region57: #{tpu_custom_call.1} parent=1 // pred_fallthru
      _
    // Predicated region
    $region58: #{tpu_custom_call.1} parent=1 // pred_check
      _
    $region59: #{tpu_custom_call.1} parent=1 // pred_check_branch
      %128 = sbr.rel (0) target = $region61
    $region60: #{tpu_custom_call.1} parent=1 // pred_region
      %129 = dma.done [#allocation6], 128
    $region61: #{tpu_custom_call.1} parent=1 // pred_fallthru
      _
    // Predicated region
    $region62: #{tpu_custom_call.1} parent=1 // pred_check
      _
    $region63: #{tpu_custom_call.1} parent=1 // pred_check_branch
      %131 = sbr.rel (0) target = $region65
    $region64: #{tpu_custom_call.1} parent=1 // pred_region
      %132 = dma.done [#allocation6], 128
    $region65: #{tpu_custom_call.1} parent=1 // pred_fallthru
      _
    // Predicated region
    $region66: #{tpu_custom_call.1} parent=1 // pred_check
      _
    $region67: #{tpu_custom_call.1} parent=1 // pred_check_branch
      %134 = sbr.rel (0) target = $region69
    $region68: #{tpu_custom_call.1} parent=1 // pred_region
      %135 = dma.done [#allocation9], 1024
    $region69: #{tpu_custom_call.1} parent=1 // pred_fallthru
      _
    // Predicated region
    $region70: #{tpu_custom_call.1} parent=1 // pred_check
      _
    $region71: #{tpu_custom_call.1} parent=1 // pred_check_branch
      %137 = sbr.rel (0) target = $region73
    $region72: #{tpu_custom_call.1} parent=1 // pred_region
      %138 = dma.done [#allocation9], 1024
    $region73: #{tpu_custom_call.1} parent=1 // pred_fallthru
      _
    // Predicated region
    $region74: #{tpu_custom_call.1} parent=1 // pred_check
      _
    $region75: #{tpu_custom_call.1} parent=1 // pred_check_branch
      %140 = sbr.rel (0) target = $region77
    $region76: #{tpu_custom_call.1} parent=1 // pred_region
      %141 = dma.done [#allocation12], 2048
    $region77: #{tpu_custom_call.1} parent=1 // pred_fallthru
      _
    // Predicated region
    $region78: #{tpu_custom_call.1} parent=1 // pred_check
      _
    $region79: #{tpu_custom_call.1} parent=1 // pred_check_branch
      %143 = sbr.rel (0) target = $region81
    $region80: #{tpu_custom_call.1} parent=1 // pred_region
      %144 = dma.done [#allocation12], 2048
    $region81: #{tpu_custom_call.1} parent=1 // pred_fallthru
      _
    // Predicated region
    $region82: #{tpu_custom_call.1} parent=1 // pred_check
      _
    $region83: #{tpu_custom_call.1} parent=1 // pred_check_branch
      %146 = sbr.rel (0) target = $region85
    $region84: #{tpu_custom_call.1} parent=1 // pred_region
      %147 = dma.done [#allocation15], 1024
    $region85: #{tpu_custom_call.1} parent=1 // pred_fallthru
      _
    %v149 = vld [vmem:[#allocation2] sm:$0xff]
    %v150 = vld [vmem:[#allocation5] sm:$0xff]
    %v151 = vpack.c.bf16 %v149, %v149
    %v152 = vld [vmem:[#allocation8] sm:$0xf]
    %v153 = vld [vmem:[#allocation8 + $0x4] sm:$0xf]
    %v154 = vld [vmem:[#allocation8 + $0x8] sm:$0xf]
    %v155 = vld [vmem:[#allocation8 + $0xc] sm:$0xf]
    %v156 = vld [vmem:[#allocation8 + $0x10] sm:$0xf]
    %v157 = vld [vmem:[#allocation8 + $0x14] sm:$0xf]
    %v158 = vld [vmem:[#allocation8 + $0x18] sm:$0xf]
    %v159 = vld [vmem:[#allocation8 + $0x1c] sm:$0xf]
    %v160 = vld [vmem:[#allocation8 + $0x20] sm:$0xf]
    %v161 = vld [vmem:[#allocation8 + $0x24] sm:$0xf]
    %v162 = vld [vmem:[#allocation8 + $0x28] sm:$0xf]
    %v163 = vld [vmem:[#allocation8 + $0x2c] sm:$0xf]
    %v164 = vld [vmem:[#allocation8 + $0x30] sm:$0xf]
    %v165 = vld [vmem:[#allocation8 + $0x34] sm:$0xf]
    %v166 = vld [vmem:[#allocation8 + $0x38] sm:$0xf]
    %v167 = vld [vmem:[#allocation8 + $0x3c] sm:$0xf]
    %v168 = vld [vmem:[%s4] sm:$0x1]
    %v170 = vlaneseq
    %v171 = vshrl.u32 %v170, 7
    %v172 = vsub.s32 0, %v171
    %v173 = vrot.slane %v168, %v172
    %v191 = vunpack.c.l.b16 %v152
    %v192 = vunpack.c.l.b16 %v153
    %v193 = vunpack.c.l.b16 %v154
    %v194 = vunpack.c.l.b16 %v155
    %v195 = vunpack.c.l.b16 %v156
    %v196 = vunpack.c.l.b16 %v157
    %v197 = vunpack.c.l.b16 %v158
    %v198 = vunpack.c.l.b16 %v159
    %v199 = vunpack.c.l.b16 %v160
    %v200 = vunpack.c.l.b16 %v161
    %v201 = vunpack.c.l.b16 %v162
    %v202 = vunpack.c.l.b16 %v163
    %v203 = vunpack.c.l.b16 %v164
    %v204 = vunpack.c.l.b16 %v165
    %v205 = vunpack.c.l.b16 %v166
    %v206 = vunpack.c.l.b16 %v167
    %v207 = vpack.c.b16 %v192, %v191
    %v208 = vpack.c.b16 %v194, %v193
    %v209 = vpack.c.b16 %v196, %v195
    %v210 = vpack.c.b16 %v198, %v197
    %v211 = vpack.c.b16 %v200, %v199
    %v212 = vpack.c.b16 %v202, %v201
    %v213 = vpack.c.b16 %v204, %v203
    %v214 = vpack.c.b16 %v206, %v205
    %223 = vmatprep.subr.bf16.mxu0 0
    %224 = vmatpush1.bf16.msra.mxu0 %v207
    %225 = vmatprep.subr.bf16.mxu0 0
    %226 = vmatpush1.bf16.msra.mxu0 %v208
    %227 = vmatprep.subr.bf16.mxu0 0
    %228 = vmatpush1.bf16.msra.mxu0 %v209
    %229 = vmatprep.subr.bf16.mxu0 0
    %230 = vmatpush1.bf16.msra.mxu0 %v210
    %231 = vmatprep.subr.bf16.mxu0 0
    %232 = vmatpush1.bf16.msra.mxu0 %v211
    %233 = vmatprep.subr.bf16.mxu0 0
    %234 = vmatpush1.bf16.msra.mxu0 %v212
    %235 = vmatprep.subr.bf16.mxu0 0
    %236 = vmatpush1.bf16.msra.mxu0 %v213
    %237 = vmatprep.subr.bf16.mxu0 0
    %238 = vmatpush1.bf16.msra.mxu0 %v214
    %239 = vmatprep.subr.bf16.mxu0 0
    %240 = vmatpush1.bf16.msra.mxu0 0
    %241 = vmatprep.subr.bf16.mxu0 0
    %242 = vmatpush1.bf16.msra.mxu0 0
    %243 = vmatprep.subr.bf16.mxu0 0
    %244 = vmatpush1.bf16.msra.mxu0 0
    %245 = vmatprep.subr.bf16.mxu0 0
    %246 = vmatpush1.bf16.msra.mxu0 0
    %247 = vmatprep.subr.bf16.mxu0 0
    %248 = vmatpush1.bf16.msra.mxu0 0
    %249 = vmatprep.subr.bf16.mxu0 0
    %250 = vmatpush1.bf16.msra.mxu0 0
    %251 = vmatprep.subr.bf16.mxu0 0
    %252 = vmatpush1.bf16.msra.mxu0 0
    %253 = vmatprep.subr.bf16.mxu0 0
    %254 = vmatpush1.bf16.msra.mxu0 0
    %255 = vmatprep.mubr.bf16.mxu0 0
    %256 = vmatmul.mubr.bf16.gmra.mrb[0].mxu0 %v151
    %v257 = vpop.f32.mrb[0].mxu0
    %v258 = vadd.f32 %v173, %v257
    %v259 = vpop.f32.mrb[0].mxu0
    %v260 = vpop.f32.mrb[0].mxu0
    %v261 = vpop.f32.mrb[0].mxu0
    %262 = vdwg.mxu0
    %v263 = vmax.f32 %v258, 0.0
    %v264 = vpack.c.bf16 %v263, %v263
    %v265 = vld [vmem:[#allocation10] sm:$0xf]
    %v266 = vld [vmem:[#allocation10 + $0x4] sm:$0xf]
    %v267 = vld [vmem:[#allocation10 + $0x8] sm:$0xf]
    %v268 = vld [vmem:[#allocation10 + $0xc] sm:$0xf]
    %v269 = vld [vmem:[#allocation10 + $0x10] sm:$0xf]
    %v270 = vld [vmem:[#allocation10 + $0x14] sm:$0xf]
    %v271 = vld [vmem:[#allocation10 + $0x18] sm:$0xf]
    %v272 = vld [vmem:[#allocation10 + $0x1c] sm:$0xf]
    %v273 = vld [vmem:[#allocation10 + $0x20] sm:$0xf]
    %v274 = vld [vmem:[#allocation10 + $0x24] sm:$0xf]
    %v275 = vld [vmem:[#allocation10 + $0x28] sm:$0xf]
    %v276 = vld [vmem:[#allocation10 + $0x2c] sm:$0xf]
    %v277 = vld [vmem:[#allocation10 + $0x30] sm:$0xf]
    %v278 = vld [vmem:[#allocation10 + $0x34] sm:$0xf]
    %v279 = vld [vmem:[#allocation10 + $0x38] sm:$0xf]
    %v280 = vld [vmem:[#allocation10 + $0x3c] sm:$0xf]
    %v281 = vld [vmem:[%s6] sm:$0x1]
    %v283 = vlaneseq
    %v284 = vshrl.u32 %v283, 7
    %v285 = vsub.s32 0, %v284
    %v286 = vrot.slane %v281, %v285
    %v304 = vunpack.c.l.b16 %v265
    %v305 = vunpack.c.l.b16 %v266
    %v306 = vunpack.c.l.b16 %v267
    %v307 = vunpack.c.l.b16 %v268
    %v308 = vunpack.c.l.b16 %v269
    %v309 = vunpack.c.l.b16 %v270
    %v310 = vunpack.c.l.b16 %v271
    %v311 = vunpack.c.l.b16 %v272
    %v312 = vunpack.c.l.b16 %v273
    %v313 = vunpack.c.l.b16 %v274
    %v314 = vunpack.c.l.b16 %v275
    %v315 = vunpack.c.l.b16 %v276
    %v316 = vunpack.c.l.b16 %v277
    %v317 = vunpack.c.l.b16 %v278
    %v318 = vunpack.c.l.b16 %v279
    %v319 = vunpack.c.l.b16 %v280
    %v320 = vpack.c.b16 %v305, %v304
    %v321 = vpack.c.b16 %v307, %v306
    %v322 = vpack.c.b16 %v309, %v308
    %v323 = vpack.c.b16 %v311, %v310
    %v324 = vpack.c.b16 %v313, %v312
    %v325 = vpack.c.b16 %v315, %v314
    %v326 = vpack.c.b16 %v317, %v316
    %v327 = vpack.c.b16 %v319, %v318
    %336 = vmatprep.subr.bf16.mxu0 0
    %337 = vmatpush1.bf16.msra.mxu0 %v320
    %338 = vmatprep.subr.bf16.mxu0 0
    %339 = vmatpush1.bf16.msra.mxu0 %v321
    %340 = vmatprep.subr.bf16.mxu0 0
    %341 = vmatpush1.bf16.msra.mxu0 %v322
    %342 = vmatprep.subr.bf16.mxu0 0
    %343 = vmatpush1.bf16.msra.mxu0 %v323
    %344 = vmatprep.subr.bf16.mxu0 0
    %345 = vmatpush1.bf16.msra.mxu0 %v324
    %346 = vmatprep.subr.bf16.mxu0 0
    %347 = vmatpush1.bf16.msra.mxu0 %v325
    %348 = vmatprep.subr.bf16.mxu0 0
    %349 = vmatpush1.bf16.msra.mxu0 %v326
    %350 = vmatprep.subr.bf16.mxu0 0
    %351 = vmatpush1.bf16.msra.mxu0 %v327
    %352 = vmatprep.subr.bf16.mxu0 0
    %353 = vmatpush1.bf16.msra.mxu0 0
    %354 = vmatprep.subr.bf16.mxu0 0
    %355 = vmatpush1.bf16.msra.mxu0 0
    %356 = vmatprep.subr.bf16.mxu0 0
    %357 = vmatpush1.bf16.msra.mxu0 0
    %358 = vmatprep.subr.bf16.mxu0 0
    %359 = vmatpush1.bf16.msra.mxu0 0
    %360 = vmatprep.subr.bf16.mxu0 0
    %361 = vmatpush1.bf16.msra.mxu0 0
    %362 = vmatprep.subr.bf16.mxu0 0
    %363 = vmatpush1.bf16.msra.mxu0 0
    %364 = vmatprep.subr.bf16.mxu0 0
    %365 = vmatpush1.bf16.msra.mxu0 0
    %366 = vmatprep.subr.bf16.mxu0 0
    %367 = vmatpush1.bf16.msra.mxu0 0
    %368 = vmatprep.mubr.bf16.mxu0 0
    %369 = vmatmul.mubr.bf16.gmra.mrb[0].mxu0 %v264
    %v370 = vpop.f32.mrb[0].mxu0
    %v371 = vadd.f32 %v286, %v370
    %v372 = vpop.f32.mrb[0].mxu0
    %v373 = vpop.f32.mrb[0].mxu0
    %v374 = vpop.f32.mrb[0].mxu0
    %375 = vdwg.mxu0
    %v376 = vpack.c.bf16 %v371, %v371
    %v377 = vld [vmem:[#allocation11] sm:$0xff]
    %v378 = vld [vmem:[#allocation11 + $0x8] sm:$0xff]
    %v379 = vld [vmem:[#allocation11 + $0x10] sm:$0xff]
    %v380 = vld [vmem:[#allocation11 + $0x18] sm:$0xff]
    %v381 = vld [vmem:[#allocation11 + $0x20] sm:$0xff]
    %v382 = vld [vmem:[#allocation11 + $0x28] sm:$0xff]
    %v383 = vld [vmem:[#allocation11 + $0x30] sm:$0xff]
    %v384 = vld [vmem:[#allocation11 + $0x38] sm:$0xff]
    %v385 = vld [vmem:[#allocation11 + $0x40] sm:$0xff]
    %v386 = vld [vmem:[#allocation11 + $0x48] sm:$0xff]
    %v387 = vld [vmem:[#allocation11 + $0x50] sm:$0xff]
    %v388 = vld [vmem:[#allocation11 + $0x58] sm:$0xff]
    %v389 = vld [vmem:[#allocation11 + $0x60] sm:$0xff]
    %v390 = vld [vmem:[#allocation11 + $0x68] sm:$0xff]
    %v391 = vld [vmem:[#allocation11 + $0x70] sm:$0xff]
    %v392 = vld [vmem:[#allocation11 + $0x78] sm:$0xff]
    %v393 = vld [vmem:[%s8] sm:$0x3]
    %v395 = vlaneseq
    %v396 = vshrl.u32 %v395, 7
    %v397 = vsub.s32 0, %v396
    %v398 = vrot.slane %v393, %v397
    %v399 = vlaneseq
    %v400 = vshrl.u32 %v399, 7
    %v401 = vsub.s32 1, %v400
    %v402 = vrot.slane %v393, %v401
    %v421 = vunpack.c.l.b16 %v377
    %v422 = vunpack.c.h.b16 %v377
    %v423 = vunpack.c.l.b16 %v378
    %v424 = vunpack.c.h.b16 %v378
    %v425 = vunpack.c.l.b16 %v379
    %v426 = vunpack.c.h.b16 %v379
    %v427 = vunpack.c.l.b16 %v380
    %v428 = vunpack.c.h.b16 %v380
    %v429 = vunpack.c.l.b16 %v381
    %v430 = vunpack.c.h.b16 %v381
    %v431 = vunpack.c.l.b16 %v382
    %v432 = vunpack.c.h.b16 %v382
    %v433 = vunpack.c.l.b16 %v383
    %v434 = vunpack.c.h.b16 %v383
    %v435 = vunpack.c.l.b16 %v384
    %v436 = vunpack.c.h.b16 %v384
    %v437 = vunpack.c.l.b16 %v385
    %v438 = vunpack.c.h.b16 %v385
    %v439 = vunpack.c.l.b16 %v386
    %v440 = vunpack.c.h.b16 %v386
    %v441 = vunpack.c.l.b16 %v387
    %v442 = vunpack.c.h.b16 %v387
    %v443 = vunpack.c.l.b16 %v388
    %v444 = vunpack.c.h.b16 %v388
    %v445 = vunpack.c.l.b16 %v389
    %v446 = vunpack.c.h.b16 %v389
    %v447 = vunpack.c.l.b16 %v390
    %v448 = vunpack.c.h.b16 %v390
    %v449 = vunpack.c.l.b16 %v391
    %v450 = vunpack.c.h.b16 %v391
    %v451 = vunpack.c.l.b16 %v392
    %v452 = vunpack.c.h.b16 %v392
    %v453 = vpack.c.b16 %v423, %v421
    %v454 = vpack.c.b16 %v424, %v422
    %v455 = vpack.c.b16 %v427, %v425
    %v456 = vpack.c.b16 %v428, %v426
    %v457 = vpack.c.b16 %v431, %v429
    %v458 = vpack.c.b16 %v432, %v430
    %v459 = vpack.c.b16 %v435, %v433
    %v460 = vpack.c.b16 %v436, %v434
    %v461 = vpack.c.b16 %v439, %v437
    %v462 = vpack.c.b16 %v440, %v438
    %v463 = vpack.c.b16 %v443, %v441
    %v464 = vpack.c.b16 %v444, %v442
    %v465 = vpack.c.b16 %v447, %v445
    %v466 = vpack.c.b16 %v448, %v446
    %v467 = vpack.c.b16 %v451, %v449
    %v468 = vpack.c.b16 %v452, %v450
    %485 = vmatprep.subr.bf16.mxu0 %v454
    %486 = vmatpush1.bf16.msra.mxu0 %v453
    %487 = vmatprep.subr.bf16.mxu0 %v456
    %488 = vmatpush1.bf16.msra.mxu0 %v455
    %489 = vmatprep.subr.bf16.mxu0 %v458
    %490 = vmatpush1.bf16.msra.mxu0 %v457
    %491 = vmatprep.subr.bf16.mxu0 %v460
    %492 = vmatpush1.bf16.msra.mxu0 %v459
    %493 = vmatprep.subr.bf16.mxu0 %v462
    %494 = vmatpush1.bf16.msra.mxu0 %v461
    %495 = vmatprep.subr.bf16.mxu0 %v464
    %496 = vmatpush1.bf16.msra.mxu0 %v463
    %497 = vmatprep.subr.bf16.mxu0 %v466
    %498 = vmatpush1.bf16.msra.mxu0 %v465
    %499 = vmatprep.subr.bf16.mxu0 %v468
    %500 = vmatpush1.bf16.msra.mxu0 %v467
    %501 = vmatprep.subr.bf16.mxu0 0
    %502 = vmatpush1.bf16.msra.mxu0 0
    %503 = vmatprep.subr.bf16.mxu0 0
    %504 = vmatpush1.bf16.msra.mxu0 0
    %505 = vmatprep.subr.bf16.mxu0 0
    %506 = vmatpush1.bf16.msra.mxu0 0
    %507 = vmatprep.subr.bf16.mxu0 0
    %508 = vmatpush1.bf16.msra.mxu0 0
    %509 = vmatprep.subr.bf16.mxu0 0
    %510 = vmatpush1.bf16.msra.mxu0 0
    %511 = vmatprep.subr.bf16.mxu0 0
    %512 = vmatpush1.bf16.msra.mxu0 0
    %513 = vmatprep.subr.bf16.mxu0 0
    %514 = vmatpush1.bf16.msra.mxu0 0
    %515 = vmatprep.subr.bf16.mxu0 0
    %516 = vmatpush1.bf16.msra.mxu0 0
    %517 = vmatprep.mubr.bf16.mxu0 0
    %518 = vmatmul.mubr.bf16.gmra.mrb[0].mxu0 %v376
    %v519 = vpop.f32.mrb[0].mxu0
    %v520 = vadd.f32 %v398, %v519
    %v521 = vpop.f32.mrb[0].mxu0
    %v522 = vadd.f32 %v402, %v521
    %v523 = vpop.f32.mrb[0].mxu0
    %v524 = vpop.f32.mrb[0].mxu0
    %525 = vdwg.mxu0
    %v526 = vmax.f32 %v522, -4.0
    %v527 = vmin.f32 %v526, 15.0
    %v528 = vmul.f32 %v527, 1.442695
    %v529 = vpow.pop %v528
    %v530 = vld [vmem:[#allocation7] sm:$0xff]
    %v531 = vmul.f32 %v529, %v530
    %v532 = vadd.f32 %v520, %v531
    %v533 = vpack.c.bf16 %v150, %v150
    %v534 = vpack.c.bf16 %v532, %v532
    %v535 = vld [vmem:[#allocation13] sm:$0xf]
    %v536 = vld [vmem:[#allocation13 + $0x4] sm:$0xf]
    %v537 = vld [vmem:[#allocation13 + $0x8] sm:$0xf]
    %v538 = vld [vmem:[#allocation13 + $0xc] sm:$0xf]
    %v539 = vld [vmem:[#allocation13 + $0x10] sm:$0xf]
    %v540 = vld [vmem:[#allocation13 + $0x14] sm:$0xf]
    %v541 = vld [vmem:[#allocation13 + $0x18] sm:$0xf]
    %v542 = vld [vmem:[#allocation13 + $0x1c] sm:$0xf]
    %v543 = vld [vmem:[#allocation13 + $0x20] sm:$0xf]
    %v544 = vld [vmem:[#allocation13 + $0x24] sm:$0xf]
    %v545 = vld [vmem:[#allocation13 + $0x28] sm:$0xf]
    %v546 = vld [vmem:[#allocation13 + $0x2c] sm:$0xf]
    %v547 = vld [vmem:[#allocation13 + $0x30] sm:$0xf]
    %v548 = vld [vmem:[#allocation13 + $0x34] sm:$0xf]
    %v549 = vld [vmem:[#allocation13 + $0x38] sm:$0xf]
    %v550 = vld [vmem:[#allocation13 + $0x3c] sm:$0xf]
    %v551 = vld [vmem:[#allocation13 + $0x40] sm:$0xf]
    %v552 = vld [vmem:[#allocation13 + $0x44] sm:$0xf]
    %v553 = vld [vmem:[#allocation13 + $0x48] sm:$0xf]
    %v554 = vld [vmem:[#allocation13 + $0x4c] sm:$0xf]
    %v555 = vld [vmem:[#allocation13 + $0x50] sm:$0xf]
    %v556 = vld [vmem:[#allocation13 + $0x54] sm:$0xf]
    %v557 = vld [vmem:[#allocation13 + $0x58] sm:$0xf]
    %v558 = vld [vmem:[#allocation13 + $0x5c] sm:$0xf]
    %v559 = vld [vmem:[#allocation13 + $0x60] sm:$0xf]
    %v560 = vld [vmem:[#allocation13 + $0x64] sm:$0xf]
    %v561 = vld [vmem:[#allocation13 + $0x68] sm:$0xf]
    %v562 = vld [vmem:[#allocation13 + $0x6c] sm:$0xf]
    %v563 = vld [vmem:[#allocation13 + $0x70] sm:$0xf]
    %v564 = vld [vmem:[#allocation13 + $0x74] sm:$0xf]
    %v565 = vld [vmem:[#allocation13 + $0x78] sm:$0xf]
    %v566 = vld [vmem:[#allocation13 + $0x7c] sm:$0xf]
    %v567 = vld [vmem:[%s10] sm:$0x1]
    %v569 = vlaneseq
    %v570 = vshrl.u32 %v569, 7
    %v571 = vsub.s32 0, %v570
    %v572 = vrot.slane %v567, %v571
    %v606 = vunpack.c.l.b16 %v535
    %v607 = vunpack.c.l.b16 %v536
    %v608 = vunpack.c.l.b16 %v537
    %v609 = vunpack.c.l.b16 %v538
    %v610 = vunpack.c.l.b16 %v539
    %v611 = vunpack.c.l.b16 %v540
    %v612 = vunpack.c.l.b16 %v541
    %v613 = vunpack.c.l.b16 %v542
    %v614 = vunpack.c.l.b16 %v543
    %v615 = vunpack.c.l.b16 %v544
    %v616 = vunpack.c.l.b16 %v545
    %v617 = vunpack.c.l.b16 %v546
    %v618 = vunpack.c.l.b16 %v547
    %v619 = vunpack.c.l.b16 %v548
    %v620 = vunpack.c.l.b16 %v549
    %v621 = vunpack.c.l.b16 %v550
    %v622 = vunpack.c.l.b16 %v551
    %v623 = vunpack.c.l.b16 %v552
    %v624 = vunpack.c.l.b16 %v553
    %v625 = vunpack.c.l.b16 %v554
    %v626 = vunpack.c.l.b16 %v555
    %v627 = vunpack.c.l.b16 %v556
    %v628 = vunpack.c.l.b16 %v557
    %v629 = vunpack.c.l.b16 %v558
    %v630 = vunpack.c.l.b16 %v559
    %v631 = vunpack.c.l.b16 %v560
    %v632 = vunpack.c.l.b16 %v561
    %v633 = vunpack.c.l.b16 %v562
    %v634 = vunpack.c.l.b16 %v563
    %v635 = vunpack.c.l.b16 %v564
    %v636 = vunpack.c.l.b16 %v565
    %v637 = vunpack.c.l.b16 %v566
    %v638 = vpack.c.b16 %v607, %v606
    %v639 = vpack.c.b16 %v609, %v608
    %v640 = vpack.c.b16 %v611, %v610
    %v641 = vpack.c.b16 %v613, %v612
    %v642 = vpack.c.b16 %v615, %v614
    %v643 = vpack.c.b16 %v617, %v616
    %v644 = vpack.c.b16 %v619, %v618
    %v645 = vpack.c.b16 %v621, %v620
    %v646 = vpack.c.b16 %v623, %v622
    %v647 = vpack.c.b16 %v625, %v624
    %v648 = vpack.c.b16 %v627, %v626
    %v649 = vpack.c.b16 %v629, %v628
    %v650 = vpack.c.b16 %v631, %v630
    %v651 = vpack.c.b16 %v633, %v632
    %v652 = vpack.c.b16 %v635, %v634
    %v653 = vpack.c.b16 %v637, %v636
    %670 = vmatprep.subr.bf16.mxu0 0
    %671 = vmatpush1.bf16.msra.mxu0 %v638
    %672 = vmatprep.subr.bf16.mxu0 0
    %673 = vmatpush1.bf16.msra.mxu0 %v639
    %674 = vmatprep.subr.bf16.mxu0 0
    %675 = vmatpush1.bf16.msra.mxu0 %v640
    %676 = vmatprep.subr.bf16.mxu0 0
    %677 = vmatpush1.bf16.msra.mxu0 %v641
    %678 = vmatprep.subr.bf16.mxu0 0
    %679 = vmatpush1.bf16.msra.mxu0 %v642
    %680 = vmatprep.subr.bf16.mxu0 0
    %681 = vmatpush1.bf16.msra.mxu0 %v643
    %682 = vmatprep.subr.bf16.mxu0 0
    %683 = vmatpush1.bf16.msra.mxu0 %v644
    %684 = vmatprep.subr.bf16.mxu0 0
    %685 = vmatpush1.bf16.msra.mxu0 %v645
    %686 = vmatprep.subr.bf16.mxu0 0
    %687 = vmatpush1.bf16.msra.mxu0 %v646
    %688 = vmatprep.subr.bf16.mxu0 0
    %689 = vmatpush1.bf16.msra.mxu0 %v647
    %690 = vmatprep.subr.bf16.mxu0 0
    %691 = vmatpush1.bf16.msra.mxu0 %v648
    %692 = vmatprep.subr.bf16.mxu0 0
    %693 = vmatpush1.bf16.msra.mxu0 %v649
    %694 = vmatprep.subr.bf16.mxu0 0
    %695 = vmatpush1.bf16.msra.mxu0 %v650
    %696 = vmatprep.subr.bf16.mxu0 0
    %697 = vmatpush1.bf16.msra.mxu0 %v651
    %698 = vmatprep.subr.bf16.mxu0 0
    %699 = vmatpush1.bf16.msra.mxu0 %v652
    %700 = vmatprep.subr.bf16.mxu0 0
    %701 = vmatpush1.bf16.msra.mxu0 %v653
    %702 = vmatprep.mubr.bf16.mxu0 %v534
    %703 = vmatmul.mubr.bf16.gmra.mrb[0].mxu0 %v533
    %v704 = vpop.f32.mrb[0].mxu0
    %v705 = vadd.f32 %v572, %v704
    %v706 = vpop.f32.mrb[0].mxu0
    %v707 = vpop.f32.mrb[0].mxu0
    %v708 = vpop.f32.mrb[0].mxu0
    %709 = vdwg.mxu0
    %v710 = vmax.f32 %v705, 0.0
    %v711 = vpack.c.bf16 %v710, %v710
    %v712 = vld [vmem:[#allocation14] sm:$0xf]
    %v713 = vld [vmem:[#allocation14 + $0x4] sm:$0xf]
    %v714 = vld [vmem:[#allocation14 + $0x8] sm:$0xf]
    %v715 = vld [vmem:[#allocation14 + $0xc] sm:$0xf]
    %v716 = vld [vmem:[#allocation14 + $0x10] sm:$0xf]
    %v717 = vld [vmem:[#allocation14 + $0x14] sm:$0xf]
    %v718 = vld [vmem:[#allocation14 + $0x18] sm:$0xf]
    %v719 = vld [vmem:[#allocation14 + $0x1c] sm:$0xf]
    %v720 = vld [vmem:[#allocation14 + $0x20] sm:$0xf]
    %v721 = vld [vmem:[#allocation14 + $0x24] sm:$0xf]
    %v722 = vld [vmem:[#allocation14 + $0x28] sm:$0xf]
    %v723 = vld [vmem:[#allocation14 + $0x2c] sm:$0xf]
    %v724 = vld [vmem:[#allocation14 + $0x30] sm:$0xf]
    %v725 = vld [vmem:[#allocation14 + $0x34] sm:$0xf]
    %v726 = vld [vmem:[#allocation14 + $0x38] sm:$0xf]
    %v727 = vld [vmem:[#allocation14 + $0x3c] sm:$0xf]
    %v728 = vld [vmem:[%s12] sm:$0x1]
    %v730 = vlaneseq
    %v731 = vshrl.u32 %v730, 7
    %v732 = vsub.s32 0, %v731
    %v733 = vrot.slane %v728, %v732
    %v751 = vunpack.c.l.b16 %v712
    %v752 = vunpack.c.l.b16 %v713
    %v753 = vunpack.c.l.b16 %v714
    %v754 = vunpack.c.l.b16 %v715
    %v755 = vunpack.c.l.b16 %v716
    %v756 = vunpack.c.l.b16 %v717
    %v757 = vunpack.c.l.b16 %v718
    %v758 = vunpack.c.l.b16 %v719
    %v759 = vunpack.c.l.b16 %v720
    %v760 = vunpack.c.l.b16 %v721
    %v761 = vunpack.c.l.b16 %v722
    %v762 = vunpack.c.l.b16 %v723
    %v763 = vunpack.c.l.b16 %v724
    %v764 = vunpack.c.l.b16 %v725
    %v765 = vunpack.c.l.b16 %v726
    %v766 = vunpack.c.l.b16 %v727
    %v767 = vpack.c.b16 %v752, %v751
    %v768 = vpack.c.b16 %v754, %v753
    %v769 = vpack.c.b16 %v756, %v755
    %v770 = vpack.c.b16 %v758, %v757
    %v771 = vpack.c.b16 %v760, %v759
    %v772 = vpack.c.b16 %v762, %v761
    %v773 = vpack.c.b16 %v764, %v763
    %v774 = vpack.c.b16 %v766, %v765
    %783 = vmatprep.subr.bf16.mxu0 0
    %784 = vmatpush1.bf16.msra.mxu0 %v767
    %785 = vmatprep.subr.bf16.mxu0 0
    %786 = vmatpush1.bf16.msra.mxu0 %v768
    %787 = vmatprep.subr.bf16.mxu0 0
    %788 = vmatpush1.bf16.msra.mxu0 %v769
    %789 = vmatprep.subr.bf16.mxu0 0
    %790 = vmatpush1.bf16.msra.mxu0 %v770
    %791 = vmatprep.subr.bf16.mxu0 0
    %792 = vmatpush1.bf16.msra.mxu0 %v771
    %793 = vmatprep.subr.bf16.mxu0 0
    %794 = vmatpush1.bf16.msra.mxu0 %v772
    %795 = vmatprep.subr.bf16.mxu0 0
    %796 = vmatpush1.bf16.msra.mxu0 %v773
    %797 = vmatprep.subr.bf16.mxu0 0
    %798 = vmatpush1.bf16.msra.mxu0 %v774
    %799 = vmatprep.subr.bf16.mxu0 0
    %800 = vmatpush1.bf16.msra.mxu0 0
    %801 = vmatprep.subr.bf16.mxu0 0
    %802 = vmatpush1.bf16.msra.mxu0 0
    %803 = vmatprep.subr.bf16.mxu0 0
    %804 = vmatpush1.bf16.msra.mxu0 0
    %805 = vmatprep.subr.bf16.mxu0 0
    %806 = vmatpush1.bf16.msra.mxu0 0
    %807 = vmatprep.subr.bf16.mxu0 0
    %808 = vmatpush1.bf16.msra.mxu0 0
    %809 = vmatprep.subr.bf16.mxu0 0
    %810 = vmatpush1.bf16.msra.mxu0 0
    %811 = vmatprep.subr.bf16.mxu0 0
    %812 = vmatpush1.bf16.msra.mxu0 0
    %813 = vmatprep.subr.bf16.mxu0 0
    %814 = vmatpush1.bf16.msra.mxu0 0
    %815 = vmatprep.mubr.bf16.mxu0 0
    %816 = vmatmul.mubr.bf16.gmra.mrb[0].mxu0 %v711
    %v817 = vpop.f32.mrb[0].mxu0
    %v818 = vadd.f32 %v733, %v817
    %v819 = vpop.f32.mrb[0].mxu0
    %v820 = vpop.f32.mrb[0].mxu0
    %v821 = vpop.f32.mrb[0].mxu0
    %822 = vdwg.mxu0
    %v823 = vtanh.pop %v818
    %824 = vst [vmem:[#allocation16] sm:$0xff] %v823
    %825 = vst [vmem:[#allocation16 + $0x8] sm:$0xff] %v520
    %826 = vst [vmem:[#allocation16 + $0x10] sm:$0xff] %v529
    // Predicated region
    $region86: #{tpu_custom_call.1} parent=1 // pred_check
      _
    $region87: #{tpu_custom_call.1} parent=1 // pred_check_branch
      %828 = sbr.rel (0) target = $region89
    $region88: #{tpu_custom_call.1} parent=1 // pred_region
      %s830 = ssub.s32 384, 384
      %831 = vsyncadd [#allocation4], %s830
      %s833 = sshll.u32 [#allocation16], 4
      %s834 = int_to_ptr.vmem [resolvable:$true] %s833
      %836 = dma.vmem_to_hbm [thread:$0]  %s834, 384, %s13, [#allocation4]
    $region89: #{tpu_custom_call.1} parent=1 // pred_fallthru
      _
    // Predicated region
    $region90: #{tpu_custom_call.1} parent=1 // pred_check
      _
    $region91: #{tpu_custom_call.1} parent=1 // pred_check_branch
      %838 = sbr.rel (0) target = $region93
    $region92: #{tpu_custom_call.1} parent=1 // pred_region
      %839 = dma.done [#allocation4], 384
    $region93: #{tpu_custom_call.1} parent=1 // pred_fallthru
      _
    %840 = vsyncpa [#allocation3], 1
    %841 = vsyncpa [#allocation6], 1
    %842 = vsyncpa [#allocation9], 1
    %843 = vsyncpa [#allocation12], 1
    %844 = vsyncpa [#allocation15], 1
    %845 = vsyncpa [#allocation4], 1

</llo_original>
